<compile_context>
chip_gen: v7x
topology: tpu7x:2x2x1
jax: 0.10.0
libtpu: 0.0.40
codegen_flags: <defaults>
</compile_context>

<pallas_src>
import functools

import jax
import jax.numpy as jnp
from jax.experimental import pallas as pl
from jax.experimental.pallas import tpu as pltpu


def _banded_weights(w, W):
    """(3, 3, Cin, Cout) HWIO conv weights -> (3, W*Cin, W*Cout) block-banded.

    Folds the three kx taps *and* the width zero-padding of a stride-1 3x3
    conv into one banded block matrix per ky tap, so each ky tap becomes a
    lane-dense (rows, W*Cin) x (W*Cin, W*Cout) matmul."""
    _, _, Cin, Cout = w.shape
    src = jnp.arange(W)[:, None]          # input column  w'
    dst = jnp.arange(W)[None, :]          # output column w
    big = jnp.zeros((3, W, Cin, W, Cout), w.dtype)
    for kx in range(3):
        sel = (src - dst == kx - 1).astype(w.dtype)               # (W, W) band
        big = big + sel[None, :, None, :, None] * w[:, kx][:, None, :, None, :]
    return big.reshape(3, W * Cin, W * Cout)


def _basic_block_kernel(x_ref, w1_ref, w2_ref, b1_ref, b2_ref, mask_ref,
                        out_ref, mid_ref, *, Mv, WC):
    """One block of images per grid step.

    Layout: all refs are 2-D (rows, W*C) with rows = block_b*(H+2); each image
    occupies H+2 consecutive rows (1-row zero halo top/bottom).  `mask_ref`
    holds 1.0 for interior rows / 0.0 for halo rows, which also zeroes the
    garbage rows that straddle image boundaries in the stacked matmul."""
    xf = x_ref[...]                                     # (M, WC) bf16
    interior = mask_ref[pl.ds(0, Mv), :]                # (Mv, 1) f32 0/1

    # ---- conv1: the 3 ky taps K-stacked into ONE MXU matmul (K = 3*WC). ----
    # BN1 scale is already folded into the weight columns in the wrapper.
    lhs1 = jnp.concatenate([xf[0:Mv], xf[1:Mv + 1], xf[2:Mv + 2]], axis=1)
    acc1 = jnp.dot(lhs1, w1_ref[...], preferred_element_type=jnp.float32)
    out1 = jnp.maximum(acc1 + b1_ref[...], 0.0) * interior

    # Stage the intermediate in bf16 with per-image 1-row zero halos.  The
    # inter-image halo rows were already zeroed by `interior`; only the two
    # outermost rows of the block still need explicit zeros.
    zrow = jnp.zeros((1, WC), jnp.bfloat16)
    mid_ref[pl.ds(0, 1), :] = zrow
    mid_ref[pl.ds(Mv + 1, 1), :] = zrow
    mid_ref[pl.ds(1, Mv), :] = out1.astype(jnp.bfloat16)
    mid = mid_ref[...]                                  # (M, WC) bf16

    # ---- conv2: same single K-stacked MXU matmul. ----
    lhs2 = jnp.concatenate([mid[0:Mv], mid[1:Mv + 1], mid[2:Mv + 2]], axis=1)
    acc2 = jnp.dot(lhs2, w2_ref[...], preferred_element_type=jnp.float32)

    # bn2 bias + residual (taken from the already-resident input tile) + relu.
    identity = xf[1:Mv + 1].astype(jnp.float32)
    out2 = jnp.maximum(acc2 + b2_ref[...] + identity, 0.0) * interior

    # Lane-dense store in the same packed, H-padded layout as the input so the
    # result can feed the next BasicBlock with no re-pad / transpose.
    out_ref[pl.ds(0, 1), :] = jnp.zeros((1, WC), out_ref.dtype)
    out_ref[pl.ds(Mv + 1, 1), :] = jnp.zeros((1, WC), out_ref.dtype)
    out_ref[pl.ds(1, Mv), :] = out2.astype(out_ref.dtype)


def basic_block_forward(x_nchw, params, eps=1e-5, *, block_b=8,
                        out_dtype=jnp.bfloat16):
    """Fused BasicBlock forward.  x_nchw: (B, Cin, H, W) float32 (NCHW)."""
    x = jnp.transpose(x_nchw, (0, 2, 3, 1))            # NHWC
    B, H, W, Cin = x.shape
    w1, w2 = params["w1"], params["w2"]                 # HWIO
    Cout = w1.shape[-1]
    assert Cin == Cout, "no-downsample BasicBlock needs inplanes == planes"
    # TODO(synk): stride=2 / downsample BasicBlock variants need a separate kernel.
    WC = W * Cout

    # Batch blocking so each grid step feeds M = block_b*(H+2)-2 rows to the MXU.
    block_b = max(1, min(block_b, B))
    B_pad = -(-B // block_b) * block_b                  # pad batch to a multiple
    M = block_b * (H + 2)
    Mv = M - 2

    # bf16 activations, lane-packed and flattened to (B_pad*(H+2), W*Cin);
    # only H is zero-padded (width padding lives in the banded weights).
    x_packed = jnp.pad(x.astype(jnp.bfloat16).reshape(B, H, W * Cin),
                       ((0, B_pad - B), (1, 1), (0, 0)))
    x_packed = x_packed.reshape(B_pad * (H + 2), WC)

    # Fold inference BatchNorm into the convs: the per-channel scale goes into
    # the banded weight columns (conv is linear), the bias stays a row add.
    # TODO(synk): training-mode BatchNorm (batch stats + running-stat update) is not fused.
    s1 = params["gamma1"] / jnp.sqrt(params["var1"] + eps)
    b1 = params["beta1"] - params["mean1"] * s1
    s2 = params["gamma2"] / jnp.sqrt(params["var2"] + eps)
    b2 = params["beta2"] - params["mean2"] * s2
    s1t, s2t = jnp.tile(s1, W), jnp.tile(s2, W)         # packed (W*C,) lane layout
    b1t = jnp.tile(b1, W).reshape(1, WC)
    b2t = jnp.tile(b2, W).reshape(1, WC)

    # Banded weights with the 3 ky taps stacked along K -> one (3*WC, WC) MXU
    # operand per conv (single matmul per conv in the kernel).
    w1k = (_banded_weights(w1, W) * s1t[None, None, :]).astype(jnp.bfloat16)
    w2k = (_banded_weights(w2, W) * s2t[None, None, :]).astype(jnp.bfloat16)
    w1k = w1k.reshape(3 * WC, WC)
    w2k = w2k.reshape(3 * WC, WC)
    # TODO(synk): the banded weights scale as (W*C)^2; for real ResNet stages
    # (C >= 64) add an output-column grid axis or fall back to per-kx matmuls.

    # 1.0 for interior rows, 0.0 for per-image halo rows of the packed layout.
    mask = (jnp.arange(M) % (H + 2) < H).astype(jnp.float32).reshape(M, 1)

    # Explicit per-step VMEM budget (matters on v7x: 64 MiB physical).
    vmem_needed = (
        2 * M * WC * 2                     # input block, bf16, double-buffered
        + 2 * 2 * (3 * WC) * WC * 2        # two K-stacked weights, bf16, dbl-buffered
        + 2 * 2 * WC * 4                   # two bias rows, f32, dbl-buffered
        + 2 * M * 4                        # row mask, f32, dbl-buffered
        + 2 * M * WC * jnp.dtype(out_dtype).itemsize   # output block, dbl-buffered
        + M * WC * 2                       # bf16 staging scratch
    )
    vmem_limit = min(int(2 * vmem_needed) + (16 << 20), 64 << 20)
    # TODO(synk): once WC grows, mark the grid-invariant operands (w1k/w2k/
    # biases/mask) with pipeline_mode=pl.Buffered(1) to drop their second buffer.

    kernel = functools.partial(_basic_block_kernel, Mv=Mv, WC=WC)
    out_packed = pl.pallas_call(
        kernel,
        out_shape=jax.ShapeDtypeStruct((B_pad * (H + 2), WC), out_dtype),
        grid_spec=pltpu.PrefetchScalarGridSpec(
            num_scalar_prefetch=0,
            grid=(B_pad // block_b,),
            in_specs=[
                pl.BlockSpec((M, WC), lambda b: (b, 0)),          # image block
                pl.BlockSpec((3 * WC, WC), lambda b: (0, 0)),     # conv1 weights
                pl.BlockSpec((3 * WC, WC), lambda b: (0, 0)),     # conv2 weights
                pl.BlockSpec((1, WC), lambda b: (0, 0)),          # bn1 bias
                pl.BlockSpec((1, WC), lambda b: (0, 0)),          # bn2 bias
                pl.BlockSpec((M, 1), lambda b: (0, 0)),           # halo-row mask
            ],
            out_specs=pl.BlockSpec((M, WC), lambda b: (b, 0)),
            scratch_shapes=[pltpu.VMEM((M, WC), jnp.bfloat16)],
        ),
        compiler_params=pltpu.CompilerParams(
            dimension_semantics=("parallel",),
            vmem_limit_bytes=vmem_limit),
    )(x_packed, w1k, w2k, b1t, b2t, mask)
    # TODO(synk): when chaining BasicBlocks, return `out_packed` directly (it is
    # already in the packed, H-padded bf16 layout) and skip the NCHW round trip.

    out = out_packed.reshape(B_pad, H + 2, W, Cout)[:B, 1:H + 1]
    return jnp.transpose(out, (0, 3, 1, 2)).astype(jnp.float32)   # NCHW f32


def _reference(x_nchw, params, eps=1e-5, *, match_kernel=False):
    """Pure-JAX (XLA) reference.  match_kernel=True mirrors the kernel numerics
    (bf16 activations, BN scale folded into bf16 weights, f32 accumulation,
    bf16 staging of the intermediate and bf16 output)."""
    x = jnp.transpose(x_nchw, (0, 2, 3, 1))
    s1 = params["gamma1"] / jnp.sqrt(params["var1"] + eps)
    b1 = params["beta1"] - params["mean1"] * s1
    s2 = params["gamma2"] / jnp.sqrt(params["var2"] + eps)
    b2 = params["beta2"] - params["mean2"] * s2

    def conv(a, w):
        return jax.lax.conv_general_dilated(
            a, w, (1, 1), ((1, 1), (1, 1)),
            dimension_numbers=("NHWC", "HWIO", "NHWC"),
            preferred_element_type=jnp.float32)

    if match_kernel:
        xb = x.astype(jnp.bfloat16)
        w1e = (params["w1"] * s1).astype(jnp.bfloat16)
        w2e = (params["w2"] * s2).astype(jnp.bfloat16)
        o = jax.nn.relu(conv(xb, w1e) + b1).astype(jnp.bfloat16)
        o = conv(o, w2e) + b2
        o = jax.nn.relu(o + xb.astype(jnp.float32))
        o = o.astype(jnp.bfloat16).astype(jnp.float32)
    else:
        o = jax.nn.relu(conv(x, params["w1"]) * s1 + b1)
        o = conv(o, params["w2"]) * s2 + b2
        o = jax.nn.relu(o + x)
    return jnp.transpose(o, (0, 3, 1, 2))


def _init_params(key, inplanes, planes):
    ks = jax.random.split(key, 10)
    return {
        "w1": jax.random.normal(ks[0], (3, 3, inplanes, planes), jnp.float32) * 0.1,
        "w2": jax.random.normal(ks[1], (3, 3, planes, planes), jnp.float32) * 0.1,
        "gamma1": jax.random.uniform(ks[2], (planes,), jnp.float32, 0.5, 1.5),
        "beta1":  jax.random.normal(ks[3], (planes,), jnp.float32) * 0.1,
        "mean1":  jax.random.normal(ks[4], (planes,), jnp.float32) * 0.1,
        "var1":   jax.random.uniform(ks[5], (planes,), jnp.float32, 0.5, 1.5),
        "gamma2": jax.random.uniform(ks[6], (planes,), jnp.float32, 0.5, 1.5),
        "beta2":  jax.random.normal(ks[7], (planes,), jnp.float32) * 0.1,
        "mean2":  jax.random.normal(ks[8], (planes,), jnp.float32) * 0.1,
        "var2":   jax.random.uniform(ks[9], (planes,), jnp.float32, 0.5, 1.5),
    }


if __name__ == "__main__":
    # W * C = 128 -> lane-dense packed layout.  B=32 with block_b=8 gives a
    # 4-step grid and M = 8*(16+2)-2 = 142 rows per MXU matmul.
    B, C, H, W = 32, 8, 16, 16
    key = jax.random.PRNGKey(0)
    kx_, kp = jax.random.split(key)
    x = jax.random.normal(kx_, (B, C, H, W), jnp.float32)
    params = _init_params(kp, C, C)

    out = jax.block_until_ready(jax.jit(basic_block_forward)(x, params))
    ref_tight = _reference(x, params, match_kernel=True)     # kernel-matched numerics
    ref_f32 = _reference(x, params, match_kernel=False)      # full-f32 module reference

    assert out.shape == (B, C, H, W)
    assert bool(jnp.all(out >= 0.0))
    tight_ok = bool(jnp.all(jnp.abs(out - ref_tight) <= 1e-2 + 1e-2 * jnp.abs(ref_tight)))
    loose_ok = bool(jnp.all(jnp.abs(out - ref_f32) <= 5e-2 + 5e-2 * jnp.abs(ref_f32)))
    assert tight_ok, f"mismatch vs bf16-matched reference: {float(jnp.max(jnp.abs(out - ref_tight)))}"
    assert loose_ok, f"mismatch vs f32 module reference: {float(jnp.max(jnp.abs(out - ref_f32)))}"

    print("KERNEL_OK")
</pallas_src>

<mosaic_0001>
module attributes {stable_mosaic.version = 11 : i64} {
  func.func @_basic_block_kernel(%arg0: i32, %arg1: memref<144x128xbf16, #tpu.memory_space<vmem>>, %arg2: memref<384x128xbf16, #tpu.memory_space<vmem>>, %arg3: memref<384x128xbf16, #tpu.memory_space<vmem>>, %arg4: memref<1x128xf32, #tpu.memory_space<vmem>>, %arg5: memref<1x128xf32, #tpu.memory_space<vmem>>, %arg6: memref<144x1xf32, #tpu.memory_space<vmem>>, %arg7: memref<144x128xbf16, #tpu.memory_space<vmem>>, %arg8: memref<144x128xbf16, #tpu.memory_space<vmem>>) attributes {dimension_semantics = [#tpu.dimension_semantics<parallel>], iteration_bounds = array<i64: 4>, scalar_prefetch = 0 : i64, scratch_operands = 1 : i64, tpu.core_type = #tpu.core_type<tc>, window_params = [{transform_indices = @transform_0, window_bounds = array<i64: 144, 128>}, {pipeline_mode = #tpu.pipeline_mode<synchronous>, transform_indices = @transform_1, window_bounds = array<i64: 384, 128>}, {pipeline_mode = #tpu.pipeline_mode<synchronous>, transform_indices = @transform_2, window_bounds = array<i64: 384, 128>}, {pipeline_mode = #tpu.pipeline_mode<synchronous>, transform_indices = @transform_3, window_bounds = array<i64: 1, 128>}, {pipeline_mode = #tpu.pipeline_mode<synchronous>, transform_indices = @transform_4, window_bounds = array<i64: 1, 128>}, {pipeline_mode = #tpu.pipeline_mode<synchronous>, transform_indices = @transform_5, window_bounds = array<i64: 144, 1>}, {transform_indices = @transform_6, window_bounds = array<i64: 144, 128>}]} {
    %c0 = arith.constant 0 : index
    %c0_0 = arith.constant 0 : index
    %0 = vector.load %arg1[%c0, %c0_0] : memref<144x128xbf16, #tpu.memory_space<vmem>>, vector<144x128xbf16>
    %c0_1 = arith.constant 0 : index
    %c0_2 = arith.constant 0 : index
    %1 = vector.load %arg6[%c0_1, %c0_2] : memref<144x1xf32, #tpu.memory_space<vmem>>, vector<142x1xf32>
    %2 = vector.extract_strided_slice %0 {offsets = [0, 0], sizes = [142, 128], strides = [1, 1]} : vector<144x128xbf16> to vector<142x128xbf16>
    %3 = vector.extract_strided_slice %0 {offsets = [1, 0], sizes = [142, 128], strides = [1, 1]} : vector<144x128xbf16> to vector<142x128xbf16>
    %4 = vector.extract_strided_slice %0 {offsets = [2, 0], sizes = [142, 128], strides = [1, 1]} : vector<144x128xbf16> to vector<142x128xbf16>
    %5 = tpu.concatenate %2, %3, %4 in 1 : vector<142x128xbf16>, vector<142x128xbf16>, vector<142x128xbf16> -> vector<142x384xbf16>
    %c0_3 = arith.constant 0 : index
    %c0_4 = arith.constant 0 : index
    %6 = vector.load %arg2[%c0_3, %c0_4] : memref<384x128xbf16, #tpu.memory_space<vmem>>, vector<384x128xbf16>
    %cst = arith.constant dense<0.000000e+00> : vector<142x128xf32>
    %7 = tpu.matmul %5, %6, %cst {dimension_numbers = #tpu.dot_dimension_numbers<[1], [0], [0], [1], [0, 0, 1, 1], [], []>} : vector<142x384xbf16>, vector<384x128xbf16>, vector<142x128xf32> -> vector<142x128xf32>
    %c0_5 = arith.constant 0 : index
    %c0_6 = arith.constant 0 : index
    %8 = vector.load %arg4[%c0_5, %c0_6] : memref<1x128xf32, #tpu.memory_space<vmem>>, vector<1x128xf32>
    %9 = vector.broadcast %8 : vector<1x128xf32> to vector<142x128xf32>
    %10 = arith.addf %7, %9 : vector<142x128xf32>
    %cst_7 = arith.constant 0.000000e+00 : f32
    %11 = vector.broadcast %cst_7 : f32 to vector<142x128xf32>
    %12 = arith.maximumf %10, %11 : vector<142x128xf32>
    %13 = vector.broadcast %1 : vector<142x1xf32> to vector<142x128xf32>
    %14 = arith.mulf %12, %13 : vector<142x128xf32>
    %cst_8 = arith.constant 0.000000e+00 : bf16
    %15 = vector.broadcast %cst_8 : bf16 to vector<1x128xbf16>
    %c0_9 = arith.constant 0 : index
    %c0_10 = arith.constant 0 : index
    %16 = vector.load %arg8[%c0_9, %c0_10] : memref<144x128xbf16, #tpu.memory_space<vmem>>, vector<1x128xbf16>
    tpu.vector_store %arg8[%c0_9, %c0_10], %15 {strides = array<i32>} : memref<144x128xbf16, #tpu.memory_space<vmem>>, vector<1x128xbf16>,
    %c143 = arith.constant 143 : index
    %c0_11 = arith.constant 0 : index
    %17 = vector.load %arg8[%c143, %c0_11] : memref<144x128xbf16, #tpu.memory_space<vmem>>, vector<1x128xbf16>
    tpu.vector_store %arg8[%c143, %c0_11], %15 {strides = array<i32>} : memref<144x128xbf16, #tpu.memory_space<vmem>>, vector<1x128xbf16>,
    %18 = arith.truncf %14 : vector<142x128xf32> to vector<142x128xbf16>
    %c1 = arith.constant 1 : index
    %c0_12 = arith.constant 0 : index
    %19 = vector.load %arg8[%c1, %c0_12] : memref<144x128xbf16, #tpu.memory_space<vmem>>, vector<142x128xbf16>
    tpu.vector_store %arg8[%c1, %c0_12], %18 {strides = array<i32>} : memref<144x128xbf16, #tpu.memory_space<vmem>>, vector<142x128xbf16>,
    %c0_13 = arith.constant 0 : index
    %c0_14 = arith.constant 0 : index
    %20 = vector.load %arg8[%c0_13, %c0_14] : memref<144x128xbf16, #tpu.memory_space<vmem>>, vector<144x128xbf16>
    %21 = vector.extract_strided_slice %20 {offsets = [0, 0], sizes = [142, 128], strides = [1, 1]} : vector<144x128xbf16> to vector<142x128xbf16>
    %22 = vector.extract_strided_slice %20 {offsets = [1, 0], sizes = [142, 128], strides = [1, 1]} : vector<144x128xbf16> to vector<142x128xbf16>
    %23 = vector.extract_strided_slice %20 {offsets = [2, 0], sizes = [142, 128], strides = [1, 1]} : vector<144x128xbf16> to vector<142x128xbf16>
    %24 = tpu.concatenate %21, %22, %23 in 1 : vector<142x128xbf16>, vector<142x128xbf16>, vector<142x128xbf16> -> vector<142x384xbf16>
    %c0_15 = arith.constant 0 : index
    %c0_16 = arith.constant 0 : index
    %25 = vector.load %arg3[%c0_15, %c0_16] : memref<384x128xbf16, #tpu.memory_space<vmem>>, vector<384x128xbf16>
    %cst_17 = arith.constant dense<0.000000e+00> : vector<142x128xf32>
    %26 = tpu.matmul %24, %25, %cst_17 {dimension_numbers = #tpu.dot_dimension_numbers<[1], [0], [0], [1], [0, 0, 1, 1], [], []>} : vector<142x384xbf16>, vector<384x128xbf16>, vector<142x128xf32> -> vector<142x128xf32>
    %27 = vector.extract_strided_slice %0 {offsets = [1, 0], sizes = [142, 128], strides = [1, 1]} : vector<144x128xbf16> to vector<142x128xbf16>
    %28 = arith.extf %27 : vector<142x128xbf16> to vector<142x128xf32>
    %c0_18 = arith.constant 0 : index
    %c0_19 = arith.constant 0 : index
    %29 = vector.load %arg5[%c0_18, %c0_19] : memref<1x128xf32, #tpu.memory_space<vmem>>, vector<1x128xf32>
    %30 = vector.broadcast %29 : vector<1x128xf32> to vector<142x128xf32>
    %31 = arith.addf %26, %30 : vector<142x128xf32>
    %32 = arith.addf %31, %28 : vector<142x128xf32>
    %cst_20 = arith.constant 0.000000e+00 : f32
    %33 = vector.broadcast %cst_20 : f32 to vector<142x128xf32>
    %34 = arith.maximumf %32, %33 : vector<142x128xf32>
    %35 = vector.broadcast %1 : vector<142x1xf32> to vector<142x128xf32>
    %36 = arith.mulf %34, %35 : vector<142x128xf32>
    %cst_21 = arith.constant 0.000000e+00 : bf16
    %37 = vector.broadcast %cst_21 : bf16 to vector<1x128xbf16>
    %c0_22 = arith.constant 0 : index
    %c0_23 = arith.constant 0 : index
    %38 = vector.load %arg7[%c0_22, %c0_23] : memref<144x128xbf16, #tpu.memory_space<vmem>>, vector<1x128xbf16>
    tpu.vector_store %arg7[%c0_22, %c0_23], %37 {strides = array<i32>} : memref<144x128xbf16, #tpu.memory_space<vmem>>, vector<1x128xbf16>,
    %cst_24 = arith.constant 0.000000e+00 : bf16
    %39 = vector.broadcast %cst_24 : bf16 to vector<1x128xbf16>
    %c143_25 = arith.constant 143 : index
    %c0_26 = arith.constant 0 : index
    %40 = vector.load %arg7[%c143_25, %c0_26] : memref<144x128xbf16, #tpu.memory_space<vmem>>, vector<1x128xbf16>
    tpu.vector_store %arg7[%c143_25, %c0_26], %39 {strides = array<i32>} : memref<144x128xbf16, #tpu.memory_space<vmem>>, vector<1x128xbf16>,
    %41 = arith.truncf %36 : vector<142x128xf32> to vector<142x128xbf16>
    %c1_27 = arith.constant 1 : index
    %c0_28 = arith.constant 0 : index
    %42 = vector.load %arg7[%c1_27, %c0_28] : memref<144x128xbf16, #tpu.memory_space<vmem>>, vector<142x128xbf16>
    tpu.vector_store %arg7[%c1_27, %c0_28], %41 {strides = array<i32>} : memref<144x128xbf16, #tpu.memory_space<vmem>>, vector<142x128xbf16>,
    return
  }
  func.func @transform_0(%arg0: i32) -> (i32, i32) {
    %c0_i32 = arith.constant 0 : i32
    %c0_i32_0 = arith.constant 0 : i32
    return %arg0, %c0_i32 : i32, i32
  }
  func.func @transform_1(%arg0: i32) -> (i32, i32) {
    %c0_i32 = arith.constant 0 : i32
    %c0_i32_0 = arith.constant 0 : i32
    %c0_i32_1 = arith.constant 0 : i32
    return %c0_i32, %c0_i32_0 : i32, i32
  }
  func.func @transform_2(%arg0: i32) -> (i32, i32) {
    %c0_i32 = arith.constant 0 : i32
    %c0_i32_0 = arith.constant 0 : i32
    %c0_i32_1 = arith.constant 0 : i32
    return %c0_i32, %c0_i32_0 : i32, i32
  }
  func.func @transform_3(%arg0: i32) -> (i32, i32) {
    %c0_i32 = arith.constant 0 : i32
    %c0_i32_0 = arith.constant 0 : i32
    %c0_i32_1 = arith.constant 0 : i32
    return %c0_i32, %c0_i32_0 : i32, i32
  }
  func.func @transform_4(%arg0: i32) -> (i32, i32) {
    %c0_i32 = arith.constant 0 : i32
    %c0_i32_0 = arith.constant 0 : i32
    %c0_i32_1 = arith.constant 0 : i32
    return %c0_i32, %c0_i32_0 : i32, i32
  }
  func.func @transform_5(%arg0: i32) -> (i32, i32) {
    %c0_i32 = arith.constant 0 : i32
    %c0_i32_0 = arith.constant 0 : i32
    %c0_i32_1 = arith.constant 0 : i32
    return %c0_i32, %c0_i32_0 : i32, i32
  }
  func.func @transform_6(%arg0: i32) -> (i32, i32) {
    %c0_i32 = arith.constant 0 : i32
    %c0_i32_0 = arith.constant 0 : i32
    return %arg0, %c0_i32 : i32, i32
  }
}

</mosaic_0001>

<llo_original>
// kernel: tile.27
$region0: #{tile.27}
  #allocation0 [shape = 's32[1]{0}', space=sflag, size = 0x4, scoped, tag = 'scoped memory for tile.27']
  %s0 = inlined_call_operand.vmem [shape: f32[8], index: 0, kind: input, shape index: {}]
  %s1 = inlined_call_operand.vmem [shape: f32[16,8], index: 1, kind: output, shape index: {}]
  // Predicated region
  $region2: #{tile.27} parent=0 // pred_check
    _
  $region3: #{tile.27} parent=0 // pred_check_branch
    %3 = sbr.rel (0) target = $region5
  $region4: #{tile.27} parent=0 // pred_region
    _
  $region5: #{tile.27} parent=0 // pred_fallthru
    _
  %v4 = vld [vmem:[%s0] ss:$0 sm:$0xff]
  %5 = vst [vmem:[%s1] sm:$0xff] %v4
  %s6 = scalar_lea.vmem %s1, 8
  %7 = vst [vmem:[%s6] sm:$0xff] %v4

// kernel: mul.101
$region0: #{mul.101}
  %s0 = inlined_call_operand.vmem [shape: f32[16,8], index: 0, kind: input, shape index: {}]
  %s1 = inlined_call_operand.vmem [shape: f32[128], index: 1, kind: output, shape index: {}]
  $region1: #{mul.101} parent=0
    #allocation0 [shape = 'u8[4096]{0}', space=vmem, size = 0x1000, scoped, tag = 'scoped mem for output reshape']
    %v2 = vld [vmem:[%s0] sm:$0x1]
    %vm3 = vcmask 64512
    %4 = vst.msk [vmem:[#allocation0] sm:$0x1] %vm3, %v2
    %s5 = scalar_lea.vmem %s0, 15
    %v6 = vld [vmem:[%s5] sm:$0x1]
    %7 = vrot.lane.b32.xlu0 %v6, 120
    %v8 = vpop.permute.xlu0 %7
    %vm9 = vcmask 1048512
    %10 = vst.msk [vmem:[#allocation0] sm:$0x1] %vm9, %v8
    %s11 = scalar_lea.vmem %s0, 14
    %v12 = vld [vmem:[%s11] sm:$0x1]
    %13 = vrot.lane.b32.xlu0 %v12, 112
    %v14 = vpop.permute.xlu0 %13
    %vm15 = vcmask 982912
    %16 = vst.msk [vmem:[#allocation0] sm:$0x1] %vm15, %v14
    %s17 = scalar_lea.vmem %s0, 13
    %v18 = vld [vmem:[%s17] sm:$0x1]
    %19 = vrot.lane.b32.xlu0 %v18, 104
    %v20 = vpop.permute.xlu0 %19
    %vm21 = vcmask 917312
    %22 = vst.msk [vmem:[#allocation0] sm:$0x1] %vm21, %v20
    %s23 = scalar_lea.vmem %s0, 12
    %v24 = vld [vmem:[%s23] sm:$0x1]
    %25 = vrot.lane.b32.xlu0 %v24, 96
    %v26 = vpop.permute.xlu0 %25
    %vm27 = vcmask 851712
    %28 = vst.msk [vmem:[#allocation0] sm:$0x1] %vm27, %v26
    %s29 = scalar_lea.vmem %s0, 11
    %v30 = vld [vmem:[%s29] sm:$0x1]
    %31 = vrot.lane.b32.xlu0 %v30, 88
    %v32 = vpop.permute.xlu0 %31
    %vm33 = vcmask 786112
    %34 = vst.msk [vmem:[#allocation0] sm:$0x1] %vm33, %v32
    %s35 = scalar_lea.vmem %s0, 10
    %v36 = vld [vmem:[%s35] sm:$0x1]
    %37 = vrot.lane.b32.xlu0 %v36, 80
    %v38 = vpop.permute.xlu0 %37
    %vm39 = vcmask 720512
    %40 = vst.msk [vmem:[#allocation0] sm:$0x1] %vm39, %v38
    %s41 = scalar_lea.vmem %s0, 9
    %v42 = vld [vmem:[%s41] sm:$0x1]
    %43 = vrot.lane.b32.xlu0 %v42, 72
    %v44 = vpop.permute.xlu0 %43
    %vm45 = vcmask 654912
    %46 = vst.msk [vmem:[#allocation0] sm:$0x1] %vm45, %v44
    %s47 = scalar_lea.vmem %s0, 8
    %v48 = vld [vmem:[%s47] sm:$0x1]
    %49 = vrot.lane.b32.xlu0 %v48, 64
    %v50 = vpop.permute.xlu0 %49
    %vm51 = vcmask 589312
    %52 = vst.msk [vmem:[#allocation0] sm:$0x1] %vm51, %v50
    %s53 = scalar_lea.vmem %s0, 7
    %v54 = vld [vmem:[%s53] sm:$0x1]
    %55 = vrot.lane.b32.xlu0 %v54, 56
    %v56 = vpop.permute.xlu0 %55
    %vm57 = vcmask 523712
    %58 = vst.msk [vmem:[#allocation0] sm:$0x1] %vm57, %v56
    %s59 = scalar_lea.vmem %s0, 6
    %v60 = vld [vmem:[%s59] sm:$0x1]
    %61 = vrot.lane.b32.xlu0 %v60, 48
    %v62 = vpop.permute.xlu0 %61
    %vm63 = vcmask 458112
    %64 = vst.msk [vmem:[#allocation0] sm:$0x1] %vm63, %v62
    %s65 = scalar_lea.vmem %s0, 5
    %v66 = vld [vmem:[%s65] sm:$0x1]
    %67 = vrot.lane.b32.xlu0 %v66, 40
    %v68 = vpop.permute.xlu0 %67
    %vm69 = vcmask 392512
    %70 = vst.msk [vmem:[#allocation0] sm:$0x1] %vm69, %v68
    %s71 = scalar_lea.vmem %s0, 4
    %v72 = vld [vmem:[%s71] sm:$0x1]
    %73 = vrot.lane.b32.xlu0 %v72, 32
    %v74 = vpop.permute.xlu0 %73
    %vm75 = vcmask 326912
    %76 = vst.msk [vmem:[#allocation0] sm:$0x1] %vm75, %v74
    %s77 = scalar_lea.vmem %s0, 3
    %v78 = vld [vmem:[%s77] sm:$0x1]
    %79 = vrot.lane.b32.xlu0 %v78, 24
    %v80 = vpop.permute.xlu0 %79
    %vm81 = vcmask 261312
    %82 = vst.msk [vmem:[#allocation0] sm:$0x1] %vm81, %v80
    %s83 = scalar_lea.vmem %s0, 2
    %v84 = vld [vmem:[%s83] sm:$0x1]
    %85 = vrot.lane.b32.xlu0 %v84, 16
    %v86 = vpop.permute.xlu0 %85
    %vm87 = vcmask 195712
    %88 = vst.msk [vmem:[#allocation0] sm:$0x1] %vm87, %v86
    %s89 = scalar_lea.vmem %s0, 1
    %v90 = vld [vmem:[%s89] sm:$0x1]
    %91 = vrot.lane.b32.xlu0 %v90, 8
    %v92 = vpop.permute.xlu0 %91
    %vm93 = vcmask 130112
    %94 = vst.msk [vmem:[#allocation0] sm:$0x1] %vm93, %v92
    %s96 = sshllo.u32 0, 1
    %v98 = vld [vmem:[#allocation0] sm:%s96]
    %s99 = sshllo.u32 0, 1
    %100 = vst [vmem:[%s1] sm:%s99] %v98

// kernel: tile.32
$region0: #{tile.32}
  %s0 = inlined_call_operand.vmem [shape: f32[16,8], index: 0, kind: input, shape index: {}]
  %s1 = inlined_call_operand.vmem [shape: f32[1,128], index: 1, kind: output, shape index: {}]
  $region1: #{tile.32} parent=0
    #allocation0 [shape = 'u8[4096]{0}', space=vmem, size = 0x1000, scoped, tag = 'scoped mem for output reshape']
    %v2 = vld [vmem:[%s0] sm:$0x1]
    %vm3 = vcmask 64512
    %4 = vst.msk [vmem:[#allocation0] sm:$0x1] %vm3, %v2
    %s5 = scalar_lea.vmem %s0, 15
    %v6 = vld [vmem:[%s5] sm:$0x1]
    %7 = vrot.lane.b32.xlu0 %v6, 120
    %v8 = vpop.permute.xlu0 %7
    %vm9 = vcmask 1048512
    %10 = vst.msk [vmem:[#allocation0] sm:$0x1] %vm9, %v8
    %s11 = scalar_lea.vmem %s0, 14
    %v12 = vld [vmem:[%s11] sm:$0x1]
    %13 = vrot.lane.b32.xlu0 %v12, 112
    %v14 = vpop.permute.xlu0 %13
    %vm15 = vcmask 982912
    %16 = vst.msk [vmem:[#allocation0] sm:$0x1] %vm15, %v14
    %s17 = scalar_lea.vmem %s0, 13
    %v18 = vld [vmem:[%s17] sm:$0x1]
    %19 = vrot.lane.b32.xlu0 %v18, 104
    %v20 = vpop.permute.xlu0 %19
    %vm21 = vcmask 917312
    %22 = vst.msk [vmem:[#allocation0] sm:$0x1] %vm21, %v20
    %s23 = scalar_lea.vmem %s0, 12
    %v24 = vld [vmem:[%s23] sm:$0x1]
    %25 = vrot.lane.b32.xlu0 %v24, 96
    %v26 = vpop.permute.xlu0 %25
    %vm27 = vcmask 851712
    %28 = vst.msk [vmem:[#allocation0] sm:$0x1] %vm27, %v26
    %s29 = scalar_lea.vmem %s0, 11
    %v30 = vld [vmem:[%s29] sm:$0x1]
    %31 = vrot.lane.b32.xlu0 %v30, 88
    %v32 = vpop.permute.xlu0 %31
    %vm33 = vcmask 786112
    %34 = vst.msk [vmem:[#allocation0] sm:$0x1] %vm33, %v32
    %s35 = scalar_lea.vmem %s0, 10
    %v36 = vld [vmem:[%s35] sm:$0x1]
    %37 = vrot.lane.b32.xlu0 %v36, 80
    %v38 = vpop.permute.xlu0 %37
    %vm39 = vcmask 720512
    %40 = vst.msk [vmem:[#allocation0] sm:$0x1] %vm39, %v38
    %s41 = scalar_lea.vmem %s0, 9
    %v42 = vld [vmem:[%s41] sm:$0x1]
    %43 = vrot.lane.b32.xlu0 %v42, 72
    %v44 = vpop.permute.xlu0 %43
    %vm45 = vcmask 654912
    %46 = vst.msk [vmem:[#allocation0] sm:$0x1] %vm45, %v44
    %s47 = scalar_lea.vmem %s0, 8
    %v48 = vld [vmem:[%s47] sm:$0x1]
    %49 = vrot.lane.b32.xlu0 %v48, 64
    %v50 = vpop.permute.xlu0 %49
    %vm51 = vcmask 589312
    %52 = vst.msk [vmem:[#allocation0] sm:$0x1] %vm51, %v50
    %s53 = scalar_lea.vmem %s0, 7
    %v54 = vld [vmem:[%s53] sm:$0x1]
    %55 = vrot.lane.b32.xlu0 %v54, 56
    %v56 = vpop.permute.xlu0 %55
    %vm57 = vcmask 523712
    %58 = vst.msk [vmem:[#allocation0] sm:$0x1] %vm57, %v56
    %s59 = scalar_lea.vmem %s0, 6
    %v60 = vld [vmem:[%s59] sm:$0x1]
    %61 = vrot.lane.b32.xlu0 %v60, 48
    %v62 = vpop.permute.xlu0 %61
    %vm63 = vcmask 458112
    %64 = vst.msk [vmem:[#allocation0] sm:$0x1] %vm63, %v62
    %s65 = scalar_lea.vmem %s0, 5
    %v66 = vld [vmem:[%s65] sm:$0x1]
    %67 = vrot.lane.b32.xlu0 %v66, 40
    %v68 = vpop.permute.xlu0 %67
    %vm69 = vcmask 392512
    %70 = vst.msk [vmem:[#allocation0] sm:$0x1] %vm69, %v68
    %s71 = scalar_lea.vmem %s0, 4
    %v72 = vld [vmem:[%s71] sm:$0x1]
    %73 = vrot.lane.b32.xlu0 %v72, 32
    %v74 = vpop.permute.xlu0 %73
    %vm75 = vcmask 326912
    %76 = vst.msk [vmem:[#allocation0] sm:$0x1] %vm75, %v74
    %s77 = scalar_lea.vmem %s0, 3
    %v78 = vld [vmem:[%s77] sm:$0x1]
    %79 = vrot.lane.b32.xlu0 %v78, 24
    %v80 = vpop.permute.xlu0 %79
    %vm81 = vcmask 261312
    %82 = vst.msk [vmem:[#allocation0] sm:$0x1] %vm81, %v80
    %s83 = scalar_lea.vmem %s0, 2
    %v84 = vld [vmem:[%s83] sm:$0x1]
    %85 = vrot.lane.b32.xlu0 %v84, 16
    %v86 = vpop.permute.xlu0 %85
    %vm87 = vcmask 195712
    %88 = vst.msk [vmem:[#allocation0] sm:$0x1] %vm87, %v86
    %s89 = scalar_lea.vmem %s0, 1
    %v90 = vld [vmem:[%s89] sm:$0x1]
    %91 = vrot.lane.b32.xlu0 %v90, 8
    %v92 = vpop.permute.xlu0 %91
    %vm93 = vcmask 130112
    %94 = vst.msk [vmem:[#allocation0] sm:$0x1] %vm93, %v92
    %s96 = sshllo.u32 0, 1
    %v98 = vld [vmem:[#allocation0] sm:%s96]
    %s99 = sshllo.u32 0, 1
    %100 = vst [vmem:[%s1] sm:%s99] %v98

// kernel: basic_block_forward.1
$region0: #{basic_block_forward.1}
  #allocation0 [shape = 'u32[]', space=smem, size = 0x4, offset = 0x4, fixed_abs, tag = 'smem constant byte address 0x4 - core index']
  #allocation1 [shape = 'u32[144,128]{1,0:T(1,128)}', space=vmem, size = 0x12000, scoped, tag = 'internal scratch']
  #allocation2 [shape = 'bf16[144,128]{1,0:T(16,128)(2,1)}', space=vmem, size = 0x9000, scoped, tag = 'scratch operand']
  %s0 = inlined_call_operand.vmem [shape: bf16[576,128], index: 0, kind: input, shape index: {}]
  %s1 = inlined_call_operand.vmem [shape: bf16[384,128], index: 1, kind: input, shape index: {}]
  %s2 = inlined_call_operand.vmem [shape: bf16[384,128], index: 2, kind: input, shape index: {}]
  %s3 = inlined_call_operand.vmem [shape: f32[1,128], index: 3, kind: input, shape index: {}]
  %s4 = inlined_call_operand.vmem [shape: f32[1,128], index: 4, kind: input, shape index: {}]
  %s5 = inlined_call_operand.vmem [shape: f32[144,1], index: 5, kind: input, shape index: {}]
  %s6 = inlined_call_operand.vmem [shape: bf16[576,128], index: 6, kind: output, shape index: {}]
  %s7 = sld [smem:[#allocation0]]
  $region57: #{basic_block_forward.1} parent=0
    _
  %s9 = ssub.s32 1, %s7
  %s10 = scalar_select 0, %s9, %s7
  loop: start=0, step=1, limit=6
  $region2: #{basic_block_forward.1} parent=0 // loop_pre_header
    _
  $region3: #{basic_block_forward.1} parent=0 // loop_header
    %s12 = sphi 0, %s16
    %p13 = scmp.ge.s32.totalorder %s12, 6
    %s22 = sphi 0, %s24
    %s25 = sphi 0, %s22
    %s26 = sphi 0, %s25
    %s42 = sphi 0, %s26
    %s46 = sphi 0, %s46
    %s48 = sphi 0, %s46
    %s49 = sphi 0, %s48
    %s63 = sphi 0, %s49
    %s67 = sphi 0, %s67
    %s69 = sphi 0, %s67
    %s70 = sphi 0, %s69
    %s84 = sphi 0, %s70
    %s88 = sphi 0, %s88
    %s90 = sphi 0, %s88
    %s91 = sphi 0, %s90
    %s105 = sphi 0, %s91
    %s109 = sphi 0, %s109
    %s111 = sphi 0, %s109
    %s112 = sphi 0, %s111
    %s126 = sphi 0, %s112
    %s130 = sphi 0, %s130
    %s132 = sphi 0, %s130
    %s133 = sphi 0, %s132
    %s147 = sphi 0, %s133
    %s153 = sphi 0, %s155
    %s156 = sphi 0, %s153
    %s157 = sphi 0, %s156
    %s173 = sphi 0, %s157
  $region4: #{basic_block_forward.1} parent=0 // loop_header_branch
    %15 = sbr.rel (%p13) target = $region8
  $region5: #{basic_block_forward.1} parent=0 // loop_body
    %s17 = ssub.s32 %s12, 1
    %s18 = ssub.s32 %s12, 2
    %s19 = sadd.s32 %s12, 1
    %s20 = ssub.s32 %s12, %s19
    %p21 = scmp.eq.s32.totalorder %s20, 0
    %s23 = sadd.s32 %s22, 1
    %s24 = scalar_select %p21, %s22, %s23
    %p27 = pneg %p21
    %p28 = scmp.eq.s32.totalorder %s12, 3
    %p29 = por %p27, %p28
    %p30 = scmp.ne.s32.totalorder %s22, %s25
    %p31 = scmp.eq.s32.totalorder %s12, 0
    %p32 = por %p30, %p31
    %p33 = scmp.ne.s32.totalorder %s22, %s25
    %p34 = scmp.eq.s32.totalorder %s17, 3
    %p35 = por %p33, %p34
    %p36 = scmp.ne.s32.totalorder %s25, %s26
    %p37 = scmp.eq.s32.totalorder %s17, 0
    %p38 = por %p36, %p37
    %p39 = scmp.ne.s32.totalorder %s25, %s26
    %p40 = scmp.eq.s32.totalorder %s18, 3
    %p41 = por %p39, %p40
    %p43 = scmp.ne.s32.totalorder %s26, %s42
    %p44 = scmp.eq.s32.totalorder %s18, 0
    %p45 = por %p43, %p44
    %s47 = sadd.s32 %s46, 1
    %p50 = scmp.eq.s32.totalorder %s12, 3
    %p51 = scmp.ne.s32.totalorder %s46, %s48
    %p52 = scmp.eq.s32.totalorder %s12, 0
    %p53 = por %p51, %p52
    %p54 = scmp.ne.s32.totalorder %s46, %s48
    %p55 = scmp.eq.s32.totalorder %s17, 3
    %p56 = por %p54, %p55
    %p57 = scmp.ne.s32.totalorder %s48, %s49
    %p58 = scmp.eq.s32.totalorder %s17, 0
    %p59 = por %p57, %p58
    %p60 = scmp.ne.s32.totalorder %s48, %s49
    %p61 = scmp.eq.s32.totalorder %s18, 3
    %p62 = por %p60, %p61
    %p64 = scmp.ne.s32.totalorder %s49, %s63
    %p65 = scmp.eq.s32.totalorder %s18, 0
    %p66 = por %p64, %p65
    %s68 = sadd.s32 %s67, 1
    %p71 = scmp.eq.s32.totalorder %s12, 3
    %p72 = scmp.ne.s32.totalorder %s67, %s69
    %p73 = scmp.eq.s32.totalorder %s12, 0
    %p74 = por %p72, %p73
    %p75 = scmp.ne.s32.totalorder %s67, %s69
    %p76 = scmp.eq.s32.totalorder %s17, 3
    %p77 = por %p75, %p76
    %p78 = scmp.ne.s32.totalorder %s69, %s70
    %p79 = scmp.eq.s32.totalorder %s17, 0
    %p80 = por %p78, %p79
    %p81 = scmp.ne.s32.totalorder %s69, %s70
    %p82 = scmp.eq.s32.totalorder %s18, 3
    %p83 = por %p81, %p82
    %p85 = scmp.ne.s32.totalorder %s70, %s84
    %p86 = scmp.eq.s32.totalorder %s18, 0
    %p87 = por %p85, %p86
    %s89 = sadd.s32 %s88, 1
    %p92 = scmp.eq.s32.totalorder %s12, 3
    %p93 = scmp.ne.s32.totalorder %s88, %s90
    %p94 = scmp.eq.s32.totalorder %s12, 0
    %p95 = por %p93, %p94
    %p96 = scmp.ne.s32.totalorder %s88, %s90
    %p97 = scmp.eq.s32.totalorder %s17, 3
    %p98 = por %p96, %p97
    %p99 = scmp.ne.s32.totalorder %s90, %s91
    %p100 = scmp.eq.s32.totalorder %s17, 0
    %p101 = por %p99, %p100
    %p102 = scmp.ne.s32.totalorder %s90, %s91
    %p103 = scmp.eq.s32.totalorder %s18, 3
    %p104 = por %p102, %p103
    %p106 = scmp.ne.s32.totalorder %s91, %s105
    %p107 = scmp.eq.s32.totalorder %s18, 0
    %p108 = por %p106, %p107
    %s110 = sadd.s32 %s109, 1
    %p113 = scmp.eq.s32.totalorder %s12, 3
    %p114 = scmp.ne.s32.totalorder %s109, %s111
    %p115 = scmp.eq.s32.totalorder %s12, 0
    %p116 = por %p114, %p115
    %p117 = scmp.ne.s32.totalorder %s109, %s111
    %p118 = scmp.eq.s32.totalorder %s17, 3
    %p119 = por %p117, %p118
    %p120 = scmp.ne.s32.totalorder %s111, %s112
    %p121 = scmp.eq.s32.totalorder %s17, 0
    %p122 = por %p120, %p121
    %p123 = scmp.ne.s32.totalorder %s111, %s112
    %p124 = scmp.eq.s32.totalorder %s18, 3
    %p125 = por %p123, %p124
    %p127 = scmp.ne.s32.totalorder %s112, %s126
    %p128 = scmp.eq.s32.totalorder %s18, 0
    %p129 = por %p127, %p128
    %s131 = sadd.s32 %s130, 1
    %p134 = scmp.eq.s32.totalorder %s12, 3
    %p135 = scmp.ne.s32.totalorder %s130, %s132
    %p136 = scmp.eq.s32.totalorder %s12, 0
    %p137 = por %p135, %p136
    %p138 = scmp.ne.s32.totalorder %s130, %s132
    %p139 = scmp.eq.s32.totalorder %s17, 3
    %p140 = por %p138, %p139
    %p141 = scmp.ne.s32.totalorder %s132, %s133
    %p142 = scmp.eq.s32.totalorder %s17, 0
    %p143 = por %p141, %p142
    %p144 = scmp.ne.s32.totalorder %s132, %s133
    %p145 = scmp.eq.s32.totalorder %s18, 3
    %p146 = por %p144, %p145
    %p148 = scmp.ne.s32.totalorder %s133, %s147
    %p149 = scmp.eq.s32.totalorder %s18, 0
    %p150 = por %p148, %p149
    %s151 = ssub.s32 %s12, %s19
    %p152 = scmp.eq.s32.totalorder %s151, 0
    %s154 = sadd.s32 %s153, 1
    %s155 = scalar_select %p152, %s153, %s154
    %p158 = pneg %p152
    %p159 = scmp.eq.s32.totalorder %s12, 3
    %p160 = por %p158, %p159
    %p161 = scmp.ne.s32.totalorder %s153, %s156
    %p162 = scmp.eq.s32.totalorder %s12, 0
    %p163 = por %p161, %p162
    %p164 = scmp.ne.s32.totalorder %s153, %s156
    %p165 = scmp.eq.s32.totalorder %s17, 3
    %p166 = por %p164, %p165
    %p167 = scmp.ne.s32.totalorder %s156, %s157
    %p168 = scmp.eq.s32.totalorder %s17, 0
    %p169 = por %p167, %p168
    %p170 = scmp.ne.s32.totalorder %s156, %s157
    %p171 = scmp.eq.s32.totalorder %s18, 3
    %p172 = por %p170, %p171
    %p174 = scmp.ne.s32.totalorder %s157, %s173
    %p175 = scmp.eq.s32.totalorder %s18, 0
    %p176 = por %p174, %p175
    %p177 = scmp.le.s32.totalorder 1, %s12
    %p178 = scmp.lt.s32.totalorder %s12, 5
    %p179 = pnand %p177, %p178
    %p180 = pneg %p179
    // Predicated region
    $region9: #{basic_block_forward.1} parent=5 // pred_check
      _
    $region10: #{basic_block_forward.1} parent=5 // pred_check_branch
      %182 = sbr.rel (%p179) target = $region12
    $region11: #{basic_block_forward.1} parent=5 // pred_region
      %s183 = ssub.s32 %s12, 1
      // Predicated region
      $region13: #{basic_block_forward.1} parent=11 // pred_check
        %p184 = pneg %p59
      $region14: #{basic_block_forward.1} parent=11 // pred_check_branch
        %186 = sbr.rel (%p184) target = $region16
      $region15: #{basic_block_forward.1} parent=11 // pred_region
        _
      $region16: #{basic_block_forward.1} parent=11 // pred_fallthru
        _
      // Predicated region
      $region17: #{basic_block_forward.1} parent=11 // pred_check
        %p187 = pneg %p80
      $region18: #{basic_block_forward.1} parent=11 // pred_check_branch
        %189 = sbr.rel (%p187) target = $region20
      $region19: #{basic_block_forward.1} parent=11 // pred_region
        _
      $region20: #{basic_block_forward.1} parent=11 // pred_fallthru
        _
      // Predicated region
      $region21: #{basic_block_forward.1} parent=11 // pred_check
        %p190 = pneg %p101
      $region22: #{basic_block_forward.1} parent=11 // pred_check_branch
        %192 = sbr.rel (%p190) target = $region24
      $region23: #{basic_block_forward.1} parent=11 // pred_region
        _
      $region24: #{basic_block_forward.1} parent=11 // pred_fallthru
        _
      // Predicated region
      $region25: #{basic_block_forward.1} parent=11 // pred_check
        %p193 = pneg %p122
      $region26: #{basic_block_forward.1} parent=11 // pred_check_branch
        %195 = sbr.rel (%p193) target = $region28
      $region27: #{basic_block_forward.1} parent=11 // pred_region
        _
      $region28: #{basic_block_forward.1} parent=11 // pred_fallthru
        _
      // Predicated region
      $region29: #{basic_block_forward.1} parent=11 // pred_check
        %p196 = pneg %p143
      $region30: #{basic_block_forward.1} parent=11 // pred_check_branch
        %198 = sbr.rel (%p196) target = $region32
      $region31: #{basic_block_forward.1} parent=11 // pred_region
        _
      $region32: #{basic_block_forward.1} parent=11 // pred_fallthru
        _
    $region12: #{basic_block_forward.1} parent=5 // pred_fallthru
      _
    %p199 = scmp.lt.s32.totalorder %s12, 4
    // Predicated region
    $region33: #{basic_block_forward.1} parent=5 // pred_check
      %p200 = pneg %p199
    $region34: #{basic_block_forward.1} parent=5 // pred_check_branch
      %202 = sbr.rel (%p200) target = $region36
    $region35: #{basic_block_forward.1} parent=5 // pred_region
      // Predicated region
      $region37: #{basic_block_forward.1} parent=35 // pred_check
        %p203 = pneg %p32
      $region38: #{basic_block_forward.1} parent=35 // pred_check_branch
        %205 = sbr.rel (%p203) target = $region40
      $region39: #{basic_block_forward.1} parent=35 // pred_region
        %s206 = smul.u32 18, %s12
        %p207 = scmp.lt.s32.totalorder %s206, 71
        %s208 = scalar_select %p207, %s206, 71
        %s209 = smul.addr %s208, 4
        %s210 = scalar_lea.vmem %s0, %s209
        %s211 = smul.u32 18, %s12
      $region40: #{basic_block_forward.1} parent=35 // pred_fallthru
        _
    $region36: #{basic_block_forward.1} parent=5 // pred_fallthru
      _
    %p212 = scmp.le.s32.totalorder 1, %s12
    %p213 = scmp.lt.s32.totalorder %s12, 5
    %p214 = pnand %p212, %p213
    %p215 = pneg %p214
    // Predicated region
    $region41: #{basic_block_forward.1} parent=5 // pred_check
      _
    $region42: #{basic_block_forward.1} parent=5 // pred_check_branch
      %217 = sbr.rel (%p214) target = $region44
    $region43: #{basic_block_forward.1} parent=5 // pred_region
      %s218 = ssub.s32 %s12, 1
      %s219 = smul.u32 18, %s17
      %p220 = scmp.lt.s32.totalorder %s219, 71
      %s221 = scalar_select %p220, %s219, 71
      %s222 = smul.addr %s221, 4
      %s223 = scalar_lea.vmem %s0, %s222
      %p224 = pneg %p38
      %p225 = pneg %p35
      %p226 = pneg %p59
      %p227 = pneg %p56
      %p228 = pneg %p80
      %p229 = pneg %p77
      %p230 = pneg %p101
      %p231 = pneg %p98
      %p232 = pneg %p122
      %p233 = pneg %p119
      %p234 = pneg %p143
      %p235 = pneg %p140
      %p236 = pneg %p169
      %p237 = pneg %p166
      %s238 = smul.u32 18, %s17
      %p239 = scmp.lt.s32.totalorder %s238, 71
      %s240 = scalar_select %p239, %s238, 71
      %s241 = smul.addr %s240, 4
      %s242 = scalar_lea.vmem %s6, %s241
      %s243 = smul.u32 18, %s17
      %p244 = scmp.lt.s32.totalorder %s243, 71
      %s245 = scalar_select %p244, %s243, 71
      %s246 = smul.addr %s245, 4
      %s247 = scalar_lea.vmem %s0, %s246
      %s248 = smul.u32 18, %s17
      %s249 = smul.u32 18, %s17
      %p250 = scmp.lt.s32.totalorder %s249, 71
      %s251 = scalar_select %p250, %s249, 71
      %s252 = smul.addr %s251, 4
      %s253 = scalar_lea.vmem %s6, %s252
      %s254 = smul.u32 18, %s17
      %v256 = vld [vmem:[%s247] sm:$0xf]
      %v257 = vld [vmem:[%s247 + $0x4] sm:$0xf]
      %v258 = vld [vmem:[%s247 + $0x8] sm:$0xf]
      %v259 = vld [vmem:[%s247 + $0xc] sm:$0xf]
      %v260 = vld [vmem:[%s247 + $0x10] sm:$0xf]
      %v261 = vld [vmem:[%s247 + $0x14] sm:$0xf]
      %v262 = vld [vmem:[%s247 + $0x18] sm:$0xf]
      %v263 = vld [vmem:[%s247 + $0x1c] sm:$0xf]
      %v264 = vld [vmem:[%s247 + $0x20] sm:$0xf]
      %v265 = vld [vmem:[%s247 + $0x24] sm:$0xf]
      %v266 = vld [vmem:[%s247 + $0x28] sm:$0xf]
      %v267 = vld [vmem:[%s247 + $0x2c] sm:$0xf]
      %v268 = vld [vmem:[%s247 + $0x30] sm:$0xf]
      %v269 = vld [vmem:[%s247 + $0x34] sm:$0xf]
      %v270 = vld [vmem:[%s247 + $0x38] sm:$0xf]
      %v271 = vld [vmem:[%s247 + $0x3c] sm:$0xf]
      %v272 = vld [vmem:[%s247 + $0x40] sm:$0xf]
      %v273 = vld [vmem:[%s247 + $0x44] sm:$0xf]
      %v274 = vld [vmem:[%s5] sm:$0xff]
      %v275 = vld [vmem:[%s5 + $0x8] sm:$0xff]
      %v276 = vld [vmem:[%s5 + $0x10] sm:$0xff]
      %v277 = vld [vmem:[%s5 + $0x18] sm:$0xff]
      %v278 = vld [vmem:[%s5 + $0x20] sm:$0xff]
      %v279 = vld [vmem:[%s5 + $0x28] sm:$0xff]
      %v280 = vld [vmem:[%s5 + $0x30] sm:$0xff]
      %v281 = vld [vmem:[%s5 + $0x38] sm:$0xff]
      %v282 = vld [vmem:[%s5 + $0x40] sm:$0xff]
      %v283 = vld [vmem:[%s5 + $0x48] sm:$0xff]
      %v284 = vld [vmem:[%s5 + $0x50] sm:$0xff]
      %v285 = vld [vmem:[%s5 + $0x58] sm:$0xff]
      %v286 = vld [vmem:[%s5 + $0x60] sm:$0xff]
      %v287 = vld [vmem:[%s5 + $0x68] sm:$0xff]
      %v288 = vld [vmem:[%s5 + $0x70] sm:$0xff]
      %v289 = vld [vmem:[%s5 + $0x78] sm:$0xff]
      %v290 = vld [vmem:[%s5 + $0x80] sm:$0xff]
      %v291 = vld [vmem:[%s5 + $0x88] sm:$0x3f]
      %v310 = vunpack.c.l.b16 %v256
      %v311 = vunpack.c.l.b16 %v257
      %v312 = vunpack.c.l.b16 %v258
      %v313 = vunpack.c.l.b16 %v259
      %v314 = vunpack.c.l.b16 %v260
      %v315 = vunpack.c.l.b16 %v261
      %v316 = vunpack.c.l.b16 %v262
      %v317 = vunpack.c.l.b16 %v263
      %v318 = vunpack.c.l.b16 %v264
      %v319 = vunpack.c.l.b16 %v265
      %v320 = vunpack.c.l.b16 %v266
      %v321 = vunpack.c.l.b16 %v267
      %v322 = vunpack.c.l.b16 %v268
      %v323 = vunpack.c.l.b16 %v269
      %v324 = vunpack.c.l.b16 %v270
      %v325 = vunpack.c.l.b16 %v271
      %v326 = vunpack.c.l.b16 %v272
      %v327 = vunpack.c.l.b16 %v273
      %v328 = vpack.c.b16 %v311, %v310
      %v329 = vpack.c.b16 %v313, %v312
      %v330 = vpack.c.b16 %v315, %v314
      %v331 = vpack.c.b16 %v317, %v316
      %v332 = vpack.c.b16 %v319, %v318
      %v333 = vpack.c.b16 %v321, %v320
      %v334 = vpack.c.b16 %v323, %v322
      %v335 = vpack.c.b16 %v325, %v324
      %v336 = vpack.c.b16 %v327, %v326
      %vm346 = vsmask.f32 7424
      %v348 = vshrl.u32 %v328, 16
      %v350 = vshll.u32 %v328, 16
      %v352 = vrot.slane %v350, 1
      %v353 = vor.u32 %v348, %v352
      %v355 = vshll.u32 %v329, 16
      %v357 = vrot.slane %v355, 1
      %v358 = vsel %vm346, %v353, %v357
      %v359 = vshrl.u32 %v329, 16
      %v361 = vor.u32 %v359, %v357
      %v363 = vshll.u32 %v330, 16
      %v365 = vrot.slane %v363, 1
      %v366 = vsel %vm346, %v361, %v365
      %v367 = vshrl.u32 %v330, 16
      %v369 = vor.u32 %v367, %v365
      %v371 = vshll.u32 %v331, 16
      %v373 = vrot.slane %v371, 1
      %v374 = vsel %vm346, %v369, %v373
      %v375 = vshrl.u32 %v331, 16
      %v377 = vor.u32 %v375, %v373
      %v379 = vshll.u32 %v332, 16
      %v381 = vrot.slane %v379, 1
      %v382 = vsel %vm346, %v377, %v381
      %v383 = vshrl.u32 %v332, 16
      %v385 = vor.u32 %v383, %v381
      %v387 = vshll.u32 %v333, 16
      %v389 = vrot.slane %v387, 1
      %v390 = vsel %vm346, %v385, %v389
      %v391 = vshrl.u32 %v333, 16
      %v393 = vor.u32 %v391, %v389
      %v395 = vshll.u32 %v334, 16
      %v397 = vrot.slane %v395, 1
      %v398 = vsel %vm346, %v393, %v397
      %v399 = vshrl.u32 %v334, 16
      %v401 = vor.u32 %v399, %v397
      %v403 = vshll.u32 %v335, 16
      %v405 = vrot.slane %v403, 1
      %v406 = vsel %vm346, %v401, %v405
      %v407 = vshrl.u32 %v335, 16
      %v409 = vor.u32 %v407, %v405
      %v411 = vshll.u32 %v336, 16
      %v413 = vrot.slane %v411, 1
      %v414 = vsel %vm346, %v409, %v413
      %v415 = vshrl.u32 %v336, 16
      %v417 = vor.u32 %v415, %v413
      %vm427 = vcmask 1046528
      %v428 = vrot.slane %v328, 1
      %v429 = vrot.slane %v329, 1
      %v430 = vsel %vm427, %v428, %v429
      %v431 = vrot.slane %v330, 1
      %v432 = vsel %vm427, %v429, %v431
      %v433 = vrot.slane %v331, 1
      %v434 = vsel %vm427, %v431, %v433
      %v435 = vrot.slane %v332, 1
      %v436 = vsel %vm427, %v433, %v435
      %v437 = vrot.slane %v333, 1
      %v438 = vsel %vm427, %v435, %v437
      %v439 = vrot.slane %v334, 1
      %v440 = vsel %vm427, %v437, %v439
      %v441 = vrot.slane %v335, 1
      %v442 = vsel %vm427, %v439, %v441
      %v443 = vrot.slane %v336, 1
      %v444 = vsel %vm427, %v441, %v443
      %v454 = vld [vmem:[%s1] sm:$0xf]
      %v455 = vld [vmem:[%s1 + $0x4] sm:$0xf]
      %v456 = vld [vmem:[%s1 + $0x8] sm:$0xf]
      %v457 = vld [vmem:[%s1 + $0xc] sm:$0xf]
      %v458 = vld [vmem:[%s1 + $0x10] sm:$0xf]
      %v459 = vld [vmem:[%s1 + $0x14] sm:$0xf]
      %v460 = vld [vmem:[%s1 + $0x18] sm:$0xf]
      %v461 = vld [vmem:[%s1 + $0x1c] sm:$0xf]
      %v462 = vld [vmem:[%s1 + $0x20] sm:$0xf]
      %v463 = vld [vmem:[%s1 + $0x24] sm:$0xf]
      %v464 = vld [vmem:[%s1 + $0x28] sm:$0xf]
      %v465 = vld [vmem:[%s1 + $0x2c] sm:$0xf]
      %v466 = vld [vmem:[%s1 + $0x30] sm:$0xf]
      %v467 = vld [vmem:[%s1 + $0x34] sm:$0xf]
      %v468 = vld [vmem:[%s1 + $0x38] sm:$0xf]
      %v469 = vld [vmem:[%s1 + $0x3c] sm:$0xf]
      %v470 = vld [vmem:[%s1 + $0x40] sm:$0xf]
      %v471 = vld [vmem:[%s1 + $0x44] sm:$0xf]
      %v472 = vld [vmem:[%s1 + $0x48] sm:$0xf]
      %v473 = vld [vmem:[%s1 + $0x4c] sm:$0xf]
      %v474 = vld [vmem:[%s1 + $0x50] sm:$0xf]
      %v475 = vld [vmem:[%s1 + $0x54] sm:$0xf]
      %v476 = vld [vmem:[%s1 + $0x58] sm:$0xf]
      %v477 = vld [vmem:[%s1 + $0x5c] sm:$0xf]
      %v478 = vld [vmem:[%s1 + $0x60] sm:$0xf]
      %v479 = vld [vmem:[%s1 + $0x64] sm:$0xf]
      %v480 = vld [vmem:[%s1 + $0x68] sm:$0xf]
      %v481 = vld [vmem:[%s1 + $0x6c] sm:$0xf]
      %v482 = vld [vmem:[%s1 + $0x70] sm:$0xf]
      %v483 = vld [vmem:[%s1 + $0x74] sm:$0xf]
      %v484 = vld [vmem:[%s1 + $0x78] sm:$0xf]
      %v485 = vld [vmem:[%s1 + $0x7c] sm:$0xf]
      %v486 = vld [vmem:[%s1 + $0x80] sm:$0xf]
      %v487 = vld [vmem:[%s1 + $0x84] sm:$0xf]
      %v488 = vld [vmem:[%s1 + $0x88] sm:$0xf]
      %v489 = vld [vmem:[%s1 + $0x8c] sm:$0xf]
      %v490 = vld [vmem:[%s1 + $0x90] sm:$0xf]
      %v491 = vld [vmem:[%s1 + $0x94] sm:$0xf]
      %v492 = vld [vmem:[%s1 + $0x98] sm:$0xf]
      %v493 = vld [vmem:[%s1 + $0x9c] sm:$0xf]
      %v494 = vld [vmem:[%s1 + $0xa0] sm:$0xf]
      %v495 = vld [vmem:[%s1 + $0xa4] sm:$0xf]
      %v496 = vld [vmem:[%s1 + $0xa8] sm:$0xf]
      %v497 = vld [vmem:[%s1 + $0xac] sm:$0xf]
      %v498 = vld [vmem:[%s1 + $0xb0] sm:$0xf]
      %v499 = vld [vmem:[%s1 + $0xb4] sm:$0xf]
      %v500 = vld [vmem:[%s1 + $0xb8] sm:$0xf]
      %v501 = vld [vmem:[%s1 + $0xbc] sm:$0xf]
      %v502 = vld [vmem:[%s3] sm:$0x1]
      %v504 = vlaneseq
      %v505 = vshrl.u32 %v504, 7
      %v506 = vsub.s32 0, %v505
      %v507 = vrot.slane %v502, %v506
      %v557 = vunpack.c.l.b16 %v454
      %v558 = vunpack.c.l.b16 %v455
      %v559 = vunpack.c.l.b16 %v456
      %v560 = vunpack.c.l.b16 %v457
      %v561 = vunpack.c.l.b16 %v458
      %v562 = vunpack.c.l.b16 %v459
      %v563 = vunpack.c.l.b16 %v460
      %v564 = vunpack.c.l.b16 %v461
      %v565 = vunpack.c.l.b16 %v462
      %v566 = vunpack.c.l.b16 %v463
      %v567 = vunpack.c.l.b16 %v464
      %v568 = vunpack.c.l.b16 %v465
      %v569 = vunpack.c.l.b16 %v466
      %v570 = vunpack.c.l.b16 %v467
      %v571 = vunpack.c.l.b16 %v468
      %v572 = vunpack.c.l.b16 %v469
      %v573 = vunpack.c.l.b16 %v470
      %v574 = vunpack.c.l.b16 %v471
      %v575 = vunpack.c.l.b16 %v472
      %v576 = vunpack.c.l.b16 %v473
      %v577 = vunpack.c.l.b16 %v474
      %v578 = vunpack.c.l.b16 %v475
      %v579 = vunpack.c.l.b16 %v476
      %v580 = vunpack.c.l.b16 %v477
      %v581 = vunpack.c.l.b16 %v478
      %v582 = vunpack.c.l.b16 %v479
      %v583 = vunpack.c.l.b16 %v480
      %v584 = vunpack.c.l.b16 %v481
      %v585 = vunpack.c.l.b16 %v482
      %v586 = vunpack.c.l.b16 %v483
      %v587 = vunpack.c.l.b16 %v484
      %v588 = vunpack.c.l.b16 %v485
      %v589 = vunpack.c.l.b16 %v486
      %v590 = vunpack.c.l.b16 %v487
      %v591 = vunpack.c.l.b16 %v488
      %v592 = vunpack.c.l.b16 %v489
      %v593 = vunpack.c.l.b16 %v490
      %v594 = vunpack.c.l.b16 %v491
      %v595 = vunpack.c.l.b16 %v492
      %v596 = vunpack.c.l.b16 %v493
      %v597 = vunpack.c.l.b16 %v494
      %v598 = vunpack.c.l.b16 %v495
      %v599 = vunpack.c.l.b16 %v496
      %v600 = vunpack.c.l.b16 %v497
      %v601 = vunpack.c.l.b16 %v498
      %v602 = vunpack.c.l.b16 %v499
      %v603 = vunpack.c.l.b16 %v500
      %v604 = vunpack.c.l.b16 %v501
      %v605 = vpack.c.b16 %v558, %v557
      %v606 = vpack.c.b16 %v560, %v559
      %v607 = vpack.c.b16 %v562, %v561
      %v608 = vpack.c.b16 %v564, %v563
      %v609 = vpack.c.b16 %v566, %v565
      %v610 = vpack.c.b16 %v568, %v567
      %v611 = vpack.c.b16 %v570, %v569
      %v612 = vpack.c.b16 %v572, %v571
      %v613 = vpack.c.b16 %v574, %v573
      %v614 = vpack.c.b16 %v576, %v575
      %v615 = vpack.c.b16 %v578, %v577
      %v616 = vpack.c.b16 %v580, %v579
      %v617 = vpack.c.b16 %v582, %v581
      %v618 = vpack.c.b16 %v584, %v583
      %v619 = vpack.c.b16 %v586, %v585
      %v620 = vpack.c.b16 %v588, %v587
      %v621 = vpack.c.b16 %v590, %v589
      %v622 = vpack.c.b16 %v592, %v591
      %v623 = vpack.c.b16 %v594, %v593
      %v624 = vpack.c.b16 %v596, %v595
      %v625 = vpack.c.b16 %v598, %v597
      %v626 = vpack.c.b16 %v600, %v599
      %v627 = vpack.c.b16 %v602, %v601
      %v628 = vpack.c.b16 %v604, %v603
      %653 = vmatprep.subr.bf16.mxu0 0
      %654 = vmatpush1.bf16.msra.mxu0 %v605
      %655 = vmatprep.subr.bf16.mxu0 0
      %656 = vmatpush1.bf16.msra.mxu0 %v606
      %657 = vmatprep.subr.bf16.mxu0 0
      %658 = vmatpush1.bf16.msra.mxu0 %v607
      %659 = vmatprep.subr.bf16.mxu0 0
      %660 = vmatpush1.bf16.msra.mxu0 %v608
      %661 = vmatprep.subr.bf16.mxu0 0
      %662 = vmatpush1.bf16.msra.mxu0 %v609
      %663 = vmatprep.subr.bf16.mxu0 0
      %664 = vmatpush1.bf16.msra.mxu0 %v610
      %665 = vmatprep.subr.bf16.mxu0 0
      %666 = vmatpush1.bf16.msra.mxu0 %v611
      %667 = vmatprep.subr.bf16.mxu0 0
      %668 = vmatpush1.bf16.msra.mxu0 %v612
      %669 = vmatprep.subr.bf16.mxu0 0
      %670 = vmatpush1.bf16.msra.mxu0 %v613
      %671 = vmatprep.subr.bf16.mxu0 0
      %672 = vmatpush1.bf16.msra.mxu0 %v614
      %673 = vmatprep.subr.bf16.mxu0 0
      %674 = vmatpush1.bf16.msra.mxu0 %v615
      %675 = vmatprep.subr.bf16.mxu0 0
      %676 = vmatpush1.bf16.msra.mxu0 %v616
      %677 = vmatprep.subr.bf16.mxu0 0
      %678 = vmatpush1.bf16.msra.mxu0 %v617
      %679 = vmatprep.subr.bf16.mxu0 0
      %680 = vmatpush1.bf16.msra.mxu0 %v618
      %681 = vmatprep.subr.bf16.mxu0 0
      %682 = vmatpush1.bf16.msra.mxu0 %v619
      %683 = vmatprep.subr.bf16.mxu0 0
      %684 = vmatpush1.bf16.msra.mxu0 %v620
      %685 = vmatprep.mubr.bf16.mxu0 %v358
      %686 = vmatmul.mubr.bf16.gmra.mrb[0].mxu0 %v328
      %v687 = vpop.f32.mrb[0].mxu0
      %v688 = vadd.f32 %v507, %v687
      %v689 = vpop.f32.mrb[0].mxu0
      %v690 = vpop.f32.mrb[0].mxu0
      %v691 = vadd.f32 %v507, %v690
      %v692 = vpop.f32.mrb[0].mxu0
      %693 = vmatprep.mubr.bf16.mxu0 %v366
      %694 = vmatmul.mubr.bf16.gmra.mrb[0].mxu0 %v329
      %v695 = vpop.f32.mrb[0].mxu0
      %v696 = vadd.f32 %v507, %v695
      %v697 = vpop.f32.mrb[0].mxu0
      %v698 = vpop.f32.mrb[0].mxu0
      %v699 = vadd.f32 %v507, %v698
      %v700 = vpop.f32.mrb[0].mxu0
      %701 = vmatprep.mubr.bf16.mxu0 %v374
      %702 = vmatmul.mubr.bf16.gmra.mrb[0].mxu0 %v330
      %v703 = vpop.f32.mrb[0].mxu0
      %v704 = vadd.f32 %v507, %v703
      %v705 = vpop.f32.mrb[0].mxu0
      %v706 = vpop.f32.mrb[0].mxu0
      %v707 = vadd.f32 %v507, %v706
      %v708 = vpop.f32.mrb[0].mxu0
      %709 = vmatprep.mubr.bf16.mxu0 %v382
      %710 = vmatmul.mubr.bf16.gmra.mrb[0].mxu0 %v331
      %v711 = vpop.f32.mrb[0].mxu0
      %v712 = vadd.f32 %v507, %v711
      %v713 = vpop.f32.mrb[0].mxu0
      %v714 = vpop.f32.mrb[0].mxu0
      %v715 = vadd.f32 %v507, %v714
      %v716 = vpop.f32.mrb[0].mxu0
      %717 = vmatprep.mubr.bf16.mxu0 %v390
      %718 = vmatmul.mubr.bf16.gmra.mrb[0].mxu0 %v332
      %v719 = vpop.f32.mrb[0].mxu0
      %v720 = vadd.f32 %v507, %v719
      %v721 = vpop.f32.mrb[0].mxu0
      %v722 = vpop.f32.mrb[0].mxu0
      %v723 = vadd.f32 %v507, %v722
      %v724 = vpop.f32.mrb[0].mxu0
      %725 = vmatprep.mubr.bf16.mxu0 %v398
      %726 = vmatmul.mubr.bf16.gmra.mrb[0].mxu0 %v333
      %v727 = vpop.f32.mrb[0].mxu0
      %v728 = vadd.f32 %v507, %v727
      %v729 = vpop.f32.mrb[0].mxu0
      %v730 = vpop.f32.mrb[0].mxu0
      %v731 = vadd.f32 %v507, %v730
      %v732 = vpop.f32.mrb[0].mxu0
      %733 = vmatprep.mubr.bf16.mxu0 %v406
      %734 = vmatmul.mubr.bf16.gmra.mrb[0].mxu0 %v334
      %v735 = vpop.f32.mrb[0].mxu0
      %v736 = vadd.f32 %v507, %v735
      %v737 = vpop.f32.mrb[0].mxu0
      %v738 = vpop.f32.mrb[0].mxu0
      %v739 = vadd.f32 %v507, %v738
      %v740 = vpop.f32.mrb[0].mxu0
      %741 = vmatprep.mubr.bf16.mxu0 %v414
      %742 = vmatmul.mubr.bf16.gmra.mrb[0].mxu0 %v335
      %v743 = vpop.f32.mrb[0].mxu0
      %v744 = vadd.f32 %v507, %v743
      %v745 = vpop.f32.mrb[0].mxu0
      %v746 = vpop.f32.mrb[0].mxu0
      %v747 = vadd.f32 %v507, %v746
      %v748 = vpop.f32.mrb[0].mxu0
      %749 = vmatprep.mubr.bf16.mxu0 %v417
      %750 = vmatmul.mubr.bf16.gmra.mrb[0].mxu0 %v336
      %v751 = vpop.f32.mrb[0].mxu0
      %v752 = vadd.f32 %v507, %v751
      %v753 = vpop.f32.mrb[0].mxu0
      %v754 = vpop.f32.mrb[0].mxu0
      %v755 = vadd.f32 %v507, %v754
      %v756 = vpop.f32.mrb[0].mxu0
      %757 = vdwg.mxu0
      %758 = vmatprep.subr.bf16.mxu0 0
      %759 = vmatpush1.bf16.msra.mxu0 %v621
      %760 = vmatprep.subr.bf16.mxu0 0
      %761 = vmatpush1.bf16.msra.mxu0 %v622
      %762 = vmatprep.subr.bf16.mxu0 0
      %763 = vmatpush1.bf16.msra.mxu0 %v623
      %764 = vmatprep.subr.bf16.mxu0 0
      %765 = vmatpush1.bf16.msra.mxu0 %v624
      %766 = vmatprep.subr.bf16.mxu0 0
      %767 = vmatpush1.bf16.msra.mxu0 %v625
      %768 = vmatprep.subr.bf16.mxu0 0
      %769 = vmatpush1.bf16.msra.mxu0 %v626
      %770 = vmatprep.subr.bf16.mxu0 0
      %771 = vmatpush1.bf16.msra.mxu0 %v627
      %772 = vmatprep.subr.bf16.mxu0 0
      %773 = vmatpush1.bf16.msra.mxu0 %v628
      %774 = vmatprep.subr.bf16.mxu0 0
      %775 = vmatpush1.bf16.msra.mxu0 0
      %776 = vmatprep.subr.bf16.mxu0 0
      %777 = vmatpush1.bf16.msra.mxu0 0
      %778 = vmatprep.subr.bf16.mxu0 0
      %779 = vmatpush1.bf16.msra.mxu0 0
      %780 = vmatprep.subr.bf16.mxu0 0
      %781 = vmatpush1.bf16.msra.mxu0 0
      %782 = vmatprep.subr.bf16.mxu0 0
      %783 = vmatpush1.bf16.msra.mxu0 0
      %784 = vmatprep.subr.bf16.mxu0 0
      %785 = vmatpush1.bf16.msra.mxu0 0
      %786 = vmatprep.subr.bf16.mxu0 0
      %787 = vmatpush1.bf16.msra.mxu0 0
      %788 = vmatprep.subr.bf16.mxu0 0
      %789 = vmatpush1.bf16.msra.mxu0 0
      %790 = vmatprep.mubr.bf16.mxu0 0
      %791 = vmatmul.mubr.bf16.gmra.mrb[0].mxu0 %v430
      %v792 = vpop.f32.mrb[0].mxu0
      %v793 = vadd.f32 %v688, %v792
      %v794 = vpop.f32.mrb[0].mxu0
      %v795 = vpop.f32.mrb[0].mxu0
      %v796 = vadd.f32 %v691, %v795
      %v797 = vpop.f32.mrb[0].mxu0
      %798 = vmatprep.mubr.bf16.mxu0 0
      %799 = vmatmul.mubr.bf16.gmra.mrb[0].mxu0 %v432
      %v800 = vpop.f32.mrb[0].mxu0
      %v801 = vadd.f32 %v696, %v800
      %v802 = vpop.f32.mrb[0].mxu0
      %v803 = vpop.f32.mrb[0].mxu0
      %v804 = vadd.f32 %v699, %v803
      %v805 = vpop.f32.mrb[0].mxu0
      %806 = vmatprep.mubr.bf16.mxu0 0
      %807 = vmatmul.mubr.bf16.gmra.mrb[0].mxu0 %v434
      %v808 = vpop.f32.mrb[0].mxu0
      %v809 = vadd.f32 %v704, %v808
      %v810 = vpop.f32.mrb[0].mxu0
      %v811 = vpop.f32.mrb[0].mxu0
      %v812 = vadd.f32 %v707, %v811
      %v813 = vpop.f32.mrb[0].mxu0
      %814 = vmatprep.mubr.bf16.mxu0 0
      %815 = vmatmul.mubr.bf16.gmra.mrb[0].mxu0 %v436
      %v816 = vpop.f32.mrb[0].mxu0
      %v817 = vadd.f32 %v712, %v816
      %v818 = vpop.f32.mrb[0].mxu0
      %v819 = vpop.f32.mrb[0].mxu0
      %v820 = vadd.f32 %v715, %v819
      %v821 = vpop.f32.mrb[0].mxu0
      %822 = vmatprep.mubr.bf16.mxu0 0
      %823 = vmatmul.mubr.bf16.gmra.mrb[0].mxu0 %v438
      %v824 = vpop.f32.mrb[0].mxu0
      %v825 = vadd.f32 %v720, %v824
      %v826 = vpop.f32.mrb[0].mxu0
      %v827 = vpop.f32.mrb[0].mxu0
      %v828 = vadd.f32 %v723, %v827
      %v829 = vpop.f32.mrb[0].mxu0
      %830 = vmatprep.mubr.bf16.mxu0 0
      %831 = vmatmul.mubr.bf16.gmra.mrb[0].mxu0 %v440
      %v832 = vpop.f32.mrb[0].mxu0
      %v833 = vadd.f32 %v728, %v832
      %v834 = vpop.f32.mrb[0].mxu0
      %v835 = vpop.f32.mrb[0].mxu0
      %v836 = vadd.f32 %v731, %v835
      %v837 = vpop.f32.mrb[0].mxu0
      %838 = vmatprep.mubr.bf16.mxu0 0
      %839 = vmatmul.mubr.bf16.gmra.mrb[0].mxu0 %v442
      %v840 = vpop.f32.mrb[0].mxu0
      %v841 = vadd.f32 %v736, %v840
      %v842 = vpop.f32.mrb[0].mxu0
      %v843 = vpop.f32.mrb[0].mxu0
      %v844 = vadd.f32 %v739, %v843
      %v845 = vpop.f32.mrb[0].mxu0
      %846 = vmatprep.mubr.bf16.mxu0 0
      %847 = vmatmul.mubr.bf16.gmra.mrb[0].mxu0 %v444
      %v848 = vpop.f32.mrb[0].mxu0
      %v849 = vadd.f32 %v744, %v848
      %v850 = vpop.f32.mrb[0].mxu0
      %v851 = vpop.f32.mrb[0].mxu0
      %v852 = vadd.f32 %v747, %v851
      %v853 = vpop.f32.mrb[0].mxu0
      %854 = vmatprep.mubr.bf16.mxu0 0
      %855 = vmatmul.mubr.bf16.gmra.mrb[0].mxu0 %v443
      %v856 = vpop.f32.mrb[0].mxu0
      %v857 = vadd.f32 %v752, %v856
      %v858 = vpop.f32.mrb[0].mxu0
      %v859 = vpop.f32.mrb[0].mxu0
      %v860 = vadd.f32 %v755, %v859
      %v861 = vpop.f32.mrb[0].mxu0
      %862 = vdwg.mxu0
      %v863 = vmax.f32 %v793, 0.0
      %v864 = vmax.f32 %v796, 0.0
      %v865 = vmax.f32 %v801, 0.0
      %v866 = vmax.f32 %v804, 0.0
      %v867 = vmax.f32 %v809, 0.0
      %v868 = vmax.f32 %v812, 0.0
      %v869 = vmax.f32 %v817, 0.0
      %v870 = vmax.f32 %v820, 0.0
      %v871 = vmax.f32 %v825, 0.0
      %v872 = vmax.f32 %v828, 0.0
      %v873 = vmax.f32 %v833, 0.0
      %v874 = vmax.f32 %v836, 0.0
      %v875 = vmax.f32 %v841, 0.0
      %v876 = vmax.f32 %v844, 0.0
      %v877 = vmax.f32 %v849, 0.0
      %v878 = vmax.f32 %v852, 0.0
      %v879 = vmax.f32 %v857, 0.0
      %v880 = vmax.f32 %v860, 0.0
      %882 = vset.pattern.permute.xlu0 0
      %883 = vperm.xlu0 %882, %v274
      %v884 = vpop.permute.xlu0 %883
      %887 = vset.pattern.permute.xlu0 0
      %888 = vperm.xlu0 %887, %v275
      %v889 = vpop.permute.xlu0 %888
      %892 = vset.pattern.permute.xlu0 0
      %893 = vperm.xlu0 %892, %v276
      %v894 = vpop.permute.xlu0 %893
      %897 = vset.pattern.permute.xlu0 0
      %898 = vperm.xlu0 %897, %v277
      %v899 = vpop.permute.xlu0 %898
      %902 = vset.pattern.permute.xlu0 0
      %903 = vperm.xlu0 %902, %v278
      %v904 = vpop.permute.xlu0 %903
      %907 = vset.pattern.permute.xlu0 0
      %908 = vperm.xlu0 %907, %v279
      %v909 = vpop.permute.xlu0 %908
      %912 = vset.pattern.permute.xlu0 0
      %913 = vperm.xlu0 %912, %v280
      %v914 = vpop.permute.xlu0 %913
      %917 = vset.pattern.permute.xlu0 0
      %918 = vperm.xlu0 %917, %v281
      %v919 = vpop.permute.xlu0 %918
      %922 = vset.pattern.permute.xlu0 0
      %923 = vperm.xlu0 %922, %v282
      %v924 = vpop.permute.xlu0 %923
      %927 = vset.pattern.permute.xlu0 0
      %928 = vperm.xlu0 %927, %v283
      %v929 = vpop.permute.xlu0 %928
      %932 = vset.pattern.permute.xlu0 0
      %933 = vperm.xlu0 %932, %v284
      %v934 = vpop.permute.xlu0 %933
      %937 = vset.pattern.permute.xlu0 0
      %938 = vperm.xlu0 %937, %v285
      %v939 = vpop.permute.xlu0 %938
      %942 = vset.pattern.permute.xlu0 0
      %943 = vperm.xlu0 %942, %v286
      %v944 = vpop.permute.xlu0 %943
      %947 = vset.pattern.permute.xlu0 0
      %948 = vperm.xlu0 %947, %v287
      %v949 = vpop.permute.xlu0 %948
      %952 = vset.pattern.permute.xlu0 0
      %953 = vperm.xlu0 %952, %v288
      %v954 = vpop.permute.xlu0 %953
      %957 = vset.pattern.permute.xlu0 0
      %958 = vperm.xlu0 %957, %v289
      %v959 = vpop.permute.xlu0 %958
      %962 = vset.pattern.permute.xlu0 0
      %963 = vperm.xlu0 %962, %v290
      %v964 = vpop.permute.xlu0 %963
      %967 = vset.pattern.permute.xlu0 0
      %968 = vperm.xlu0 %967, %v291
      %v969 = vpop.permute.xlu0 %968
      %v971 = vmul.f32 %v863, %v884
      %v972 = vmul.f32 %v864, %v889
      %v973 = vmul.f32 %v865, %v894
      %v974 = vmul.f32 %v866, %v899
      %v975 = vmul.f32 %v867, %v904
      %v976 = vmul.f32 %v868, %v909
      %v977 = vmul.f32 %v869, %v914
      %v978 = vmul.f32 %v870, %v919
      %v979 = vmul.f32 %v871, %v924
      %v980 = vmul.f32 %v872, %v929
      %v981 = vmul.f32 %v873, %v934
      %v982 = vmul.f32 %v874, %v939
      %v983 = vmul.f32 %v875, %v944
      %v984 = vmul.f32 %v876, %v949
      %v985 = vmul.f32 %v877, %v954
      %v986 = vmul.f32 %v878, %v959
      %v987 = vmul.f32 %v879, %v964
      %v988 = vmul.f32 %v880, %v969
      %vm989 = vcmask 1040384
      %vm990 = vsmask.f32 256
      %vm991 = vmand %vm989, %vm990
      %v992 = vld [vmem:[#allocation2] sm:$0x1]
      %v993 = vsel %vm991, 0, %v992
      %994 = vst [vmem:[#allocation2] sm:$0x1] %v993
      %vm995 = vcmask 1047559
      %vm996 = vsmask.f32 7966
      %vm997 = vmand %vm995, %vm996
      %v998 = vld [vmem:[#allocation2 + $0x40] sm:$0x80]
      %v999 = vsel %vm997, 0, %v998
      %1000 = vst [vmem:[#allocation2 + $0x40] sm:$0x80] %v999
      %v1001 = vpack.c.bf16 %v972, %v971
      %v1002 = vpack.c.bf16 %v974, %v973
      %v1003 = vpack.c.bf16 %v976, %v975
      %v1004 = vpack.c.bf16 %v978, %v977
      %v1005 = vpack.c.bf16 %v980, %v979
      %v1006 = vpack.c.bf16 %v982, %v981
      %v1007 = vpack.c.bf16 %v984, %v983
      %v1008 = vpack.c.bf16 %v986, %v985
      %v1009 = vpack.c.bf16 %v988, %v987
      %v1011 = vshrl.u32 %v1001, 16
      %v1013 = vrot.slane %v1011, 7
      %v1014 = vshll.u32 %v1001, 16
      %v1016 = vor.u32 %v1013, %v1014
      %v1018 = vshrl.u32 %v1002, 16
      %v1020 = vrot.slane %v1018, 7
      %v1021 = vshll.u32 %v1002, 16
      %v1023 = vor.u32 %v1020, %v1021
      %v1024 = vsel %vm990, %v1013, %v1023
      %v1026 = vshrl.u32 %v1003, 16
      %v1028 = vrot.slane %v1026, 7
      %v1029 = vshll.u32 %v1003, 16
      %v1031 = vor.u32 %v1028, %v1029
      %v1032 = vsel %vm990, %v1020, %v1031
      %v1034 = vshrl.u32 %v1004, 16
      %v1036 = vrot.slane %v1034, 7
      %v1037 = vshll.u32 %v1004, 16
      %v1039 = vor.u32 %v1036, %v1037
      %v1040 = vsel %vm990, %v1028, %v1039
      %v1042 = vshrl.u32 %v1005, 16
      %v1044 = vrot.slane %v1042, 7
      %v1045 = vshll.u32 %v1005, 16
      %v1047 = vor.u32 %v1044, %v1045
      %v1048 = vsel %vm990, %v1036, %v1047
      %v1050 = vshrl.u32 %v1006, 16
      %v1052 = vrot.slane %v1050, 7
      %v1053 = vshll.u32 %v1006, 16
      %v1055 = vor.u32 %v1052, %v1053
      %v1056 = vsel %vm990, %v1044, %v1055
      %v1058 = vshrl.u32 %v1007, 16
      %v1060 = vrot.slane %v1058, 7
      %v1061 = vshll.u32 %v1007, 16
      %v1063 = vor.u32 %v1060, %v1061
      %v1064 = vsel %vm990, %v1052, %v1063
      %v1066 = vshrl.u32 %v1008, 16
      %v1068 = vrot.slane %v1066, 7
      %v1069 = vshll.u32 %v1008, 16
      %v1071 = vor.u32 %v1068, %v1069
      %v1072 = vsel %vm990, %v1060, %v1071
      %v1074 = vshrl.u32 %v1009, 16
      %v1076 = vrot.slane %v1074, 7
      %v1077 = vshll.u32 %v1009, 16
      %v1079 = vor.u32 %v1076, %v1077
      %v1080 = vsel %vm990, %v1068, %v1079
      %vm1090 = vcmask 1047552
      %vm1091 = vsmask.f32 7938
      %vm1092 = vmand %vm1090, %vm1091
      %v1093 = vld [vmem:[#allocation2] sm:$0xff]
      %v1094 = vsel %vm1092, %v1016, %v1093
      %1095 = vst [vmem:[#allocation2] sm:$0xff] %v1094
      %1096 = vst [vmem:[#allocation2 + $0x8] sm:$0xff] %v1024
      %1097 = vst [vmem:[#allocation2 + $0x10] sm:$0xff] %v1032
      %1098 = vst [vmem:[#allocation2 + $0x18] sm:$0xff] %v1040
      %1099 = vst [vmem:[#allocation2 + $0x20] sm:$0xff] %v1048
      %1100 = vst [vmem:[#allocation2 + $0x28] sm:$0xff] %v1056
      %1101 = vst [vmem:[#allocation2 + $0x30] sm:$0xff] %v1064
      %1102 = vst [vmem:[#allocation2 + $0x38] sm:$0xff] %v1072
      %vm1103 = vmand %vm1090, %vm346
      %v1104 = vld [vmem:[#allocation2 + $0x40] sm:$0xff]
      %v1105 = vsel %vm1103, %v1080, %v1104
      %1106 = vst [vmem:[#allocation2 + $0x40] sm:$0xff] %v1105
      %v1107 = vld [vmem:[#allocation2] sm:$0xff]
      %v1108 = vld [vmem:[#allocation2 + $0x8] sm:$0xff]
      %v1109 = vld [vmem:[#allocation2 + $0x10] sm:$0xff]
      %v1110 = vld [vmem:[#allocation2 + $0x18] sm:$0xff]
      %v1111 = vld [vmem:[#allocation2 + $0x20] sm:$0xff]
      %v1112 = vld [vmem:[#allocation2 + $0x28] sm:$0xff]
      %v1113 = vld [vmem:[#allocation2 + $0x30] sm:$0xff]
      %v1114 = vld [vmem:[#allocation2 + $0x38] sm:$0xff]
      %v1115 = vld [vmem:[#allocation2 + $0x40] sm:$0xff]
      %v1117 = vshrl.u32 %v1107, 16
      %v1119 = vshll.u32 %v1107, 16
      %v1121 = vrot.slane %v1119, 1
      %v1122 = vor.u32 %v1117, %v1121
      %v1124 = vshll.u32 %v1108, 16
      %v1126 = vrot.slane %v1124, 1
      %v1127 = vsel %vm346, %v1122, %v1126
      %v1128 = vshrl.u32 %v1108, 16
      %v1130 = vor.u32 %v1128, %v1126
      %v1132 = vshll.u32 %v1109, 16
      %v1134 = vrot.slane %v1132, 1
      %v1135 = vsel %vm346, %v1130, %v1134
      %v1136 = vshrl.u32 %v1109, 16
      %v1138 = vor.u32 %v1136, %v1134
      %v1140 = vshll.u32 %v1110, 16
      %v1142 = vrot.slane %v1140, 1
      %v1143 = vsel %vm346, %v1138, %v1142
      %v1144 = vshrl.u32 %v1110, 16
      %v1146 = vor.u32 %v1144, %v1142
      %v1148 = vshll.u32 %v1111, 16
      %v1150 = vrot.slane %v1148, 1
      %v1151 = vsel %vm346, %v1146, %v1150
      %v1152 = vshrl.u32 %v1111, 16
      %v1154 = vor.u32 %v1152, %v1150
      %v1156 = vshll.u32 %v1112, 16
      %v1158 = vrot.slane %v1156, 1
      %v1159 = vsel %vm346, %v1154, %v1158
      %v1160 = vshrl.u32 %v1112, 16
      %v1162 = vor.u32 %v1160, %v1158
      %v1164 = vshll.u32 %v1113, 16
      %v1166 = vrot.slane %v1164, 1
      %v1167 = vsel %vm346, %v1162, %v1166
      %v1168 = vshrl.u32 %v1113, 16
      %v1170 = vor.u32 %v1168, %v1166
      %v1172 = vshll.u32 %v1114, 16
      %v1174 = vrot.slane %v1172, 1
      %v1175 = vsel %vm346, %v1170, %v1174
      %v1176 = vshrl.u32 %v1114, 16
      %v1178 = vor.u32 %v1176, %v1174
      %v1180 = vshll.u32 %v1115, 16
      %v1182 = vrot.slane %v1180, 1
      %v1183 = vsel %vm346, %v1178, %v1182
      %v1184 = vshrl.u32 %v1115, 16
      %v1186 = vor.u32 %v1184, %v1182
      %v1205 = vrot.slane %v1107, 1
      %v1206 = vrot.slane %v1108, 1
      %v1207 = vsel %vm427, %v1205, %v1206
      %v1208 = vrot.slane %v1109, 1
      %v1209 = vsel %vm427, %v1206, %v1208
      %v1210 = vrot.slane %v1110, 1
      %v1211 = vsel %vm427, %v1208, %v1210
      %v1212 = vrot.slane %v1111, 1
      %v1213 = vsel %vm427, %v1210, %v1212
      %v1214 = vrot.slane %v1112, 1
      %v1215 = vsel %vm427, %v1212, %v1214
      %v1216 = vrot.slane %v1113, 1
      %v1217 = vsel %vm427, %v1214, %v1216
      %v1218 = vrot.slane %v1114, 1
      %v1219 = vsel %vm427, %v1216, %v1218
      %v1220 = vrot.slane %v1115, 1
      %v1221 = vsel %vm427, %v1218, %v1220
      %v1231 = vld [vmem:[%s2] sm:$0xf]
      %v1232 = vld [vmem:[%s2 + $0x4] sm:$0xf]
      %v1233 = vld [vmem:[%s2 + $0x8] sm:$0xf]
      %v1234 = vld [vmem:[%s2 + $0xc] sm:$0xf]
      %v1235 = vld [vmem:[%s2 + $0x10] sm:$0xf]
      %v1236 = vld [vmem:[%s2 + $0x14] sm:$0xf]
      %v1237 = vld [vmem:[%s2 + $0x18] sm:$0xf]
      %v1238 = vld [vmem:[%s2 + $0x1c] sm:$0xf]
      %v1239 = vld [vmem:[%s2 + $0x20] sm:$0xf]
      %v1240 = vld [vmem:[%s2 + $0x24] sm:$0xf]
      %v1241 = vld [vmem:[%s2 + $0x28] sm:$0xf]
      %v1242 = vld [vmem:[%s2 + $0x2c] sm:$0xf]
      %v1243 = vld [vmem:[%s2 + $0x30] sm:$0xf]
      %v1244 = vld [vmem:[%s2 + $0x34] sm:$0xf]
      %v1245 = vld [vmem:[%s2 + $0x38] sm:$0xf]
      %v1246 = vld [vmem:[%s2 + $0x3c] sm:$0xf]
      %v1247 = vld [vmem:[%s2 + $0x40] sm:$0xf]
      %v1248 = vld [vmem:[%s2 + $0x44] sm:$0xf]
      %v1249 = vld [vmem:[%s2 + $0x48] sm:$0xf]
      %v1250 = vld [vmem:[%s2 + $0x4c] sm:$0xf]
      %v1251 = vld [vmem:[%s2 + $0x50] sm:$0xf]
      %v1252 = vld [vmem:[%s2 + $0x54] sm:$0xf]
      %v1253 = vld [vmem:[%s2 + $0x58] sm:$0xf]
      %v1254 = vld [vmem:[%s2 + $0x5c] sm:$0xf]
      %v1255 = vld [vmem:[%s2 + $0x60] sm:$0xf]
      %v1256 = vld [vmem:[%s2 + $0x64] sm:$0xf]
      %v1257 = vld [vmem:[%s2 + $0x68] sm:$0xf]
      %v1258 = vld [vmem:[%s2 + $0x6c] sm:$0xf]
      %v1259 = vld [vmem:[%s2 + $0x70] sm:$0xf]
      %v1260 = vld [vmem:[%s2 + $0x74] sm:$0xf]
      %v1261 = vld [vmem:[%s2 + $0x78] sm:$0xf]
      %v1262 = vld [vmem:[%s2 + $0x7c] sm:$0xf]
      %v1263 = vld [vmem:[%s2 + $0x80] sm:$0xf]
      %v1264 = vld [vmem:[%s2 + $0x84] sm:$0xf]
      %v1265 = vld [vmem:[%s2 + $0x88] sm:$0xf]
      %v1266 = vld [vmem:[%s2 + $0x8c] sm:$0xf]
      %v1267 = vld [vmem:[%s2 + $0x90] sm:$0xf]
      %v1268 = vld [vmem:[%s2 + $0x94] sm:$0xf]
      %v1269 = vld [vmem:[%s2 + $0x98] sm:$0xf]
      %v1270 = vld [vmem:[%s2 + $0x9c] sm:$0xf]
      %v1271 = vld [vmem:[%s2 + $0xa0] sm:$0xf]
      %v1272 = vld [vmem:[%s2 + $0xa4] sm:$0xf]
      %v1273 = vld [vmem:[%s2 + $0xa8] sm:$0xf]
      %v1274 = vld [vmem:[%s2 + $0xac] sm:$0xf]
      %v1275 = vld [vmem:[%s2 + $0xb0] sm:$0xf]
      %v1276 = vld [vmem:[%s2 + $0xb4] sm:$0xf]
      %v1277 = vld [vmem:[%s2 + $0xb8] sm:$0xf]
      %v1278 = vld [vmem:[%s2 + $0xbc] sm:$0xf]
      %v1279 = vunpack.c.l.bf16 %v256
      %v1280 = vunpack.c.l.bf16 %v257
      %v1281 = vunpack.c.l.bf16 %v258
      %v1282 = vunpack.c.l.bf16 %v259
      %v1283 = vunpack.c.l.bf16 %v260
      %v1284 = vunpack.c.l.bf16 %v261
      %v1285 = vunpack.c.l.bf16 %v262
      %v1286 = vunpack.c.l.bf16 %v263
      %v1287 = vunpack.c.l.bf16 %v264
      %v1288 = vunpack.c.l.bf16 %v265
      %v1289 = vunpack.c.l.bf16 %v266
      %v1290 = vunpack.c.l.bf16 %v267
      %v1291 = vunpack.c.l.bf16 %v268
      %v1292 = vunpack.c.l.bf16 %v269
      %v1293 = vunpack.c.l.bf16 %v270
      %v1294 = vunpack.c.l.bf16 %v271
      %v1295 = vunpack.c.l.bf16 %v272
      %v1296 = vunpack.c.l.bf16 %v273
      %v1297 = vld [vmem:[%s4] sm:$0x1]
      %v1299 = vlaneseq
      %v1300 = vshrl.u32 %v1299, 7
      %v1301 = vsub.s32 0, %v1300
      %v1302 = vrot.slane %v1297, %v1301
      %v1352 = vunpack.c.l.b16 %v1231
      %v1353 = vunpack.c.l.b16 %v1232
      %v1354 = vunpack.c.l.b16 %v1233
      %v1355 = vunpack.c.l.b16 %v1234
      %v1356 = vunpack.c.l.b16 %v1235
      %v1357 = vunpack.c.l.b16 %v1236
      %v1358 = vunpack.c.l.b16 %v1237
      %v1359 = vunpack.c.l.b16 %v1238
      %v1360 = vunpack.c.l.b16 %v1239
      %v1361 = vunpack.c.l.b16 %v1240
      %v1362 = vunpack.c.l.b16 %v1241
      %v1363 = vunpack.c.l.b16 %v1242
      %v1364 = vunpack.c.l.b16 %v1243
      %v1365 = vunpack.c.l.b16 %v1244
      %v1366 = vunpack.c.l.b16 %v1245
      %v1367 = vunpack.c.l.b16 %v1246
      %v1368 = vunpack.c.l.b16 %v1247
      %v1369 = vunpack.c.l.b16 %v1248
      %v1370 = vunpack.c.l.b16 %v1249
      %v1371 = vunpack.c.l.b16 %v1250
      %v1372 = vunpack.c.l.b16 %v1251
      %v1373 = vunpack.c.l.b16 %v1252
      %v1374 = vunpack.c.l.b16 %v1253
      %v1375 = vunpack.c.l.b16 %v1254
      %v1376 = vunpack.c.l.b16 %v1255
      %v1377 = vunpack.c.l.b16 %v1256
      %v1378 = vunpack.c.l.b16 %v1257
      %v1379 = vunpack.c.l.b16 %v1258
      %v1380 = vunpack.c.l.b16 %v1259
      %v1381 = vunpack.c.l.b16 %v1260
      %v1382 = vunpack.c.l.b16 %v1261
      %v1383 = vunpack.c.l.b16 %v1262
      %v1384 = vunpack.c.l.b16 %v1263
      %v1385 = vunpack.c.l.b16 %v1264
      %v1386 = vunpack.c.l.b16 %v1265
      %v1387 = vunpack.c.l.b16 %v1266
      %v1388 = vunpack.c.l.b16 %v1267
      %v1389 = vunpack.c.l.b16 %v1268
      %v1390 = vunpack.c.l.b16 %v1269
      %v1391 = vunpack.c.l.b16 %v1270
      %v1392 = vunpack.c.l.b16 %v1271
      %v1393 = vunpack.c.l.b16 %v1272
      %v1394 = vunpack.c.l.b16 %v1273
      %v1395 = vunpack.c.l.b16 %v1274
      %v1396 = vunpack.c.l.b16 %v1275
      %v1397 = vunpack.c.l.b16 %v1276
      %v1398 = vunpack.c.l.b16 %v1277
      %v1399 = vunpack.c.l.b16 %v1278
      %v1400 = vpack.c.b16 %v1353, %v1352
      %v1401 = vpack.c.b16 %v1355, %v1354
      %v1402 = vpack.c.b16 %v1357, %v1356
      %v1403 = vpack.c.b16 %v1359, %v1358
      %v1404 = vpack.c.b16 %v1361, %v1360
      %v1405 = vpack.c.b16 %v1363, %v1362
      %v1406 = vpack.c.b16 %v1365, %v1364
      %v1407 = vpack.c.b16 %v1367, %v1366
      %v1408 = vpack.c.b16 %v1369, %v1368
      %v1409 = vpack.c.b16 %v1371, %v1370
      %v1410 = vpack.c.b16 %v1373, %v1372
      %v1411 = vpack.c.b16 %v1375, %v1374
      %v1412 = vpack.c.b16 %v1377, %v1376
      %v1413 = vpack.c.b16 %v1379, %v1378
      %v1414 = vpack.c.b16 %v1381, %v1380
      %v1415 = vpack.c.b16 %v1383, %v1382
      %v1416 = vpack.c.b16 %v1385, %v1384
      %v1417 = vpack.c.b16 %v1387, %v1386
      %v1418 = vpack.c.b16 %v1389, %v1388
      %v1419 = vpack.c.b16 %v1391, %v1390
      %v1420 = vpack.c.b16 %v1393, %v1392
      %v1421 = vpack.c.b16 %v1395, %v1394
      %v1422 = vpack.c.b16 %v1397, %v1396
      %v1423 = vpack.c.b16 %v1399, %v1398
      %1448 = vmatprep.subr.bf16.mxu0 0
      %1449 = vmatpush1.bf16.msra.mxu0 %v1400
      %1450 = vmatprep.subr.bf16.mxu0 0
      %1451 = vmatpush1.bf16.msra.mxu0 %v1401
      %1452 = vmatprep.subr.bf16.mxu0 0
      %1453 = vmatpush1.bf16.msra.mxu0 %v1402
      %1454 = vmatprep.subr.bf16.mxu0 0
      %1455 = vmatpush1.bf16.msra.mxu0 %v1403
      %1456 = vmatprep.subr.bf16.mxu0 0
      %1457 = vmatpush1.bf16.msra.mxu0 %v1404
      %1458 = vmatprep.subr.bf16.mxu0 0
      %1459 = vmatpush1.bf16.msra.mxu0 %v1405
      %1460 = vmatprep.subr.bf16.mxu0 0
      %1461 = vmatpush1.bf16.msra.mxu0 %v1406
      %1462 = vmatprep.subr.bf16.mxu0 0
      %1463 = vmatpush1.bf16.msra.mxu0 %v1407
      %1464 = vmatprep.subr.bf16.mxu0 0
      %1465 = vmatpush1.bf16.msra.mxu0 %v1408
      %1466 = vmatprep.subr.bf16.mxu0 0
      %1467 = vmatpush1.bf16.msra.mxu0 %v1409
      %1468 = vmatprep.subr.bf16.mxu0 0
      %1469 = vmatpush1.bf16.msra.mxu0 %v1410
      %1470 = vmatprep.subr.bf16.mxu0 0
      %1471 = vmatpush1.bf16.msra.mxu0 %v1411
      %1472 = vmatprep.subr.bf16.mxu0 0
      %1473 = vmatpush1.bf16.msra.mxu0 %v1412
      %1474 = vmatprep.subr.bf16.mxu0 0
      %1475 = vmatpush1.bf16.msra.mxu0 %v1413
      %1476 = vmatprep.subr.bf16.mxu0 0
      %1477 = vmatpush1.bf16.msra.mxu0 %v1414
      %1478 = vmatprep.subr.bf16.mxu0 0
      %1479 = vmatpush1.bf16.msra.mxu0 %v1415
      %1480 = vmatprep.mubr.bf16.mxu0 %v1127
      %1481 = vmatmul.mubr.bf16.gmra.mrb[0].mxu0 %v1107
      %v1482 = vpop.f32.mrb[0].mxu0
      %v1483 = vadd.f32 %v1302, %v1482
      %v1484 = vpop.f32.mrb[0].mxu0
      %v1485 = vpop.f32.mrb[0].mxu0
      %v1486 = vadd.f32 %v1302, %v1485
      %v1487 = vpop.f32.mrb[0].mxu0
      %1488 = vmatprep.mubr.bf16.mxu0 %v1135
      %1489 = vmatmul.mubr.bf16.gmra.mrb[0].mxu0 %v1108
      %v1490 = vpop.f32.mrb[0].mxu0
      %v1491 = vadd.f32 %v1302, %v1490
      %v1492 = vpop.f32.mrb[0].mxu0
      %v1493 = vpop.f32.mrb[0].mxu0
      %v1494 = vadd.f32 %v1302, %v1493
      %v1495 = vpop.f32.mrb[0].mxu0
      %1496 = vmatprep.mubr.bf16.mxu0 %v1143
      %1497 = vmatmul.mubr.bf16.gmra.mrb[0].mxu0 %v1109
      %v1498 = vpop.f32.mrb[0].mxu0
      %v1499 = vadd.f32 %v1302, %v1498
      %v1500 = vpop.f32.mrb[0].mxu0
      %v1501 = vpop.f32.mrb[0].mxu0
      %v1502 = vadd.f32 %v1302, %v1501
      %v1503 = vpop.f32.mrb[0].mxu0
      %1504 = vmatprep.mubr.bf16.mxu0 %v1151
      %1505 = vmatmul.mubr.bf16.gmra.mrb[0].mxu0 %v1110
      %v1506 = vpop.f32.mrb[0].mxu0
      %v1507 = vadd.f32 %v1302, %v1506
      %v1508 = vpop.f32.mrb[0].mxu0
      %v1509 = vpop.f32.mrb[0].mxu0
      %v1510 = vadd.f32 %v1302, %v1509
      %v1511 = vpop.f32.mrb[0].mxu0
      %1512 = vmatprep.mubr.bf16.mxu0 %v1159
      %1513 = vmatmul.mubr.bf16.gmra.mrb[0].mxu0 %v1111
      %v1514 = vpop.f32.mrb[0].mxu0
      %v1515 = vadd.f32 %v1302, %v1514
      %v1516 = vpop.f32.mrb[0].mxu0
      %v1517 = vpop.f32.mrb[0].mxu0
      %v1518 = vadd.f32 %v1302, %v1517
      %v1519 = vpop.f32.mrb[0].mxu0
      %1520 = vmatprep.mubr.bf16.mxu0 %v1167
      %1521 = vmatmul.mubr.bf16.gmra.mrb[0].mxu0 %v1112
      %v1522 = vpop.f32.mrb[0].mxu0
      %v1523 = vadd.f32 %v1302, %v1522
      %v1524 = vpop.f32.mrb[0].mxu0
      %v1525 = vpop.f32.mrb[0].mxu0
      %v1526 = vadd.f32 %v1302, %v1525
      %v1527 = vpop.f32.mrb[0].mxu0
      %1528 = vmatprep.mubr.bf16.mxu0 %v1175
      %1529 = vmatmul.mubr.bf16.gmra.mrb[0].mxu0 %v1113
      %v1530 = vpop.f32.mrb[0].mxu0
      %v1531 = vadd.f32 %v1302, %v1530
      %v1532 = vpop.f32.mrb[0].mxu0
      %v1533 = vpop.f32.mrb[0].mxu0
      %v1534 = vadd.f32 %v1302, %v1533
      %v1535 = vpop.f32.mrb[0].mxu0
      %1536 = vmatprep.mubr.bf16.mxu0 %v1183
      %1537 = vmatmul.mubr.bf16.gmra.mrb[0].mxu0 %v1114
      %v1538 = vpop.f32.mrb[0].mxu0
      %v1539 = vadd.f32 %v1302, %v1538
      %v1540 = vpop.f32.mrb[0].mxu0
      %v1541 = vpop.f32.mrb[0].mxu0
      %v1542 = vadd.f32 %v1302, %v1541
      %v1543 = vpop.f32.mrb[0].mxu0
      %1544 = vmatprep.mubr.bf16.mxu0 %v1186
      %1545 = vmatmul.mubr.bf16.gmra.mrb[0].mxu0 %v1115
      %v1546 = vpop.f32.mrb[0].mxu0
      %v1547 = vadd.f32 %v1302, %v1546
      %v1548 = vpop.f32.mrb[0].mxu0
      %v1549 = vpop.f32.mrb[0].mxu0
      %v1550 = vadd.f32 %v1302, %v1549
      %v1551 = vpop.f32.mrb[0].mxu0
      %1552 = vdwg.mxu0
      %1553 = vmatprep.subr.bf16.mxu0 0
      %1554 = vmatpush1.bf16.msra.mxu0 %v1416
      %1555 = vmatprep.subr.bf16.mxu0 0
      %1556 = vmatpush1.bf16.msra.mxu0 %v1417
      %1557 = vmatprep.subr.bf16.mxu0 0
      %1558 = vmatpush1.bf16.msra.mxu0 %v1418
      %1559 = vmatprep.subr.bf16.mxu0 0
      %1560 = vmatpush1.bf16.msra.mxu0 %v1419
      %1561 = vmatprep.subr.bf16.mxu0 0
      %1562 = vmatpush1.bf16.msra.mxu0 %v1420
      %1563 = vmatprep.subr.bf16.mxu0 0
      %1564 = vmatpush1.bf16.msra.mxu0 %v1421
      %1565 = vmatprep.subr.bf16.mxu0 0
      %1566 = vmatpush1.bf16.msra.mxu0 %v1422
      %1567 = vmatprep.subr.bf16.mxu0 0
      %1568 = vmatpush1.bf16.msra.mxu0 %v1423
      %1569 = vmatprep.subr.bf16.mxu0 0
      %1570 = vmatpush1.bf16.msra.mxu0 0
      %1571 = vmatprep.subr.bf16.mxu0 0
      %1572 = vmatpush1.bf16.msra.mxu0 0
      %1573 = vmatprep.subr.bf16.mxu0 0
      %1574 = vmatpush1.bf16.msra.mxu0 0
      %1575 = vmatprep.subr.bf16.mxu0 0
      %1576 = vmatpush1.bf16.msra.mxu0 0
      %1577 = vmatprep.subr.bf16.mxu0 0
      %1578 = vmatpush1.bf16.msra.mxu0 0
      %1579 = vmatprep.subr.bf16.mxu0 0
      %1580 = vmatpush1.bf16.msra.mxu0 0
      %1581 = vmatprep.subr.bf16.mxu0 0
      %1582 = vmatpush1.bf16.msra.mxu0 0
      %1583 = vmatprep.subr.bf16.mxu0 0
      %1584 = vmatpush1.bf16.msra.mxu0 0
      %1585 = vmatprep.mubr.bf16.mxu0 0
      %1586 = vmatmul.mubr.bf16.gmra.mrb[0].mxu0 %v1207
      %v1587 = vpop.f32.mrb[0].mxu0
      %v1588 = vadd.f32 %v1483, %v1587
      %v1589 = vpop.f32.mrb[0].mxu0
      %v1590 = vpop.f32.mrb[0].mxu0
      %v1591 = vadd.f32 %v1486, %v1590
      %v1592 = vpop.f32.mrb[0].mxu0
      %1593 = vmatprep.mubr.bf16.mxu0 0
      %1594 = vmatmul.mubr.bf16.gmra.mrb[0].mxu0 %v1209
      %v1595 = vpop.f32.mrb[0].mxu0
      %v1596 = vadd.f32 %v1491, %v1595
      %v1597 = vpop.f32.mrb[0].mxu0
      %v1598 = vpop.f32.mrb[0].mxu0
      %v1599 = vadd.f32 %v1494, %v1598
      %v1600 = vpop.f32.mrb[0].mxu0
      %1601 = vmatprep.mubr.bf16.mxu0 0
      %1602 = vmatmul.mubr.bf16.gmra.mrb[0].mxu0 %v1211
      %v1603 = vpop.f32.mrb[0].mxu0
      %v1604 = vadd.f32 %v1499, %v1603
      %v1605 = vpop.f32.mrb[0].mxu0
      %v1606 = vpop.f32.mrb[0].mxu0
      %v1607 = vadd.f32 %v1502, %v1606
      %v1608 = vpop.f32.mrb[0].mxu0
      %1609 = vmatprep.mubr.bf16.mxu0 0
      %1610 = vmatmul.mubr.bf16.gmra.mrb[0].mxu0 %v1213
      %v1611 = vpop.f32.mrb[0].mxu0
      %v1612 = vadd.f32 %v1507, %v1611
      %v1613 = vpop.f32.mrb[0].mxu0
      %v1614 = vpop.f32.mrb[0].mxu0
      %v1615 = vadd.f32 %v1510, %v1614
      %v1616 = vpop.f32.mrb[0].mxu0
      %1617 = vmatprep.mubr.bf16.mxu0 0
      %1618 = vmatmul.mubr.bf16.gmra.mrb[0].mxu0 %v1215
      %v1619 = vpop.f32.mrb[0].mxu0
      %v1620 = vadd.f32 %v1515, %v1619
      %v1621 = vpop.f32.mrb[0].mxu0
      %v1622 = vpop.f32.mrb[0].mxu0
      %v1623 = vadd.f32 %v1518, %v1622
      %v1624 = vpop.f32.mrb[0].mxu0
      %1625 = vmatprep.mubr.bf16.mxu0 0
      %1626 = vmatmul.mubr.bf16.gmra.mrb[0].mxu0 %v1217
      %v1627 = vpop.f32.mrb[0].mxu0
      %v1628 = vadd.f32 %v1523, %v1627
      %v1629 = vpop.f32.mrb[0].mxu0
      %v1630 = vpop.f32.mrb[0].mxu0
      %v1631 = vadd.f32 %v1526, %v1630
      %v1632 = vpop.f32.mrb[0].mxu0
      %1633 = vmatprep.mubr.bf16.mxu0 0
      %1634 = vmatmul.mubr.bf16.gmra.mrb[0].mxu0 %v1219
      %v1635 = vpop.f32.mrb[0].mxu0
      %v1636 = vadd.f32 %v1531, %v1635
      %v1637 = vpop.f32.mrb[0].mxu0
      %v1638 = vpop.f32.mrb[0].mxu0
      %v1639 = vadd.f32 %v1534, %v1638
      %v1640 = vpop.f32.mrb[0].mxu0
      %1641 = vmatprep.mubr.bf16.mxu0 0
      %1642 = vmatmul.mubr.bf16.gmra.mrb[0].mxu0 %v1221
      %v1643 = vpop.f32.mrb[0].mxu0
      %v1644 = vadd.f32 %v1539, %v1643
      %v1645 = vpop.f32.mrb[0].mxu0
      %v1646 = vpop.f32.mrb[0].mxu0
      %v1647 = vadd.f32 %v1542, %v1646
      %v1648 = vpop.f32.mrb[0].mxu0
      %1649 = vmatprep.mubr.bf16.mxu0 0
      %1650 = vmatmul.mubr.bf16.gmra.mrb[0].mxu0 %v1220
      %v1651 = vpop.f32.mrb[0].mxu0
      %v1652 = vadd.f32 %v1547, %v1651
      %v1653 = vpop.f32.mrb[0].mxu0
      %v1654 = vpop.f32.mrb[0].mxu0
      %v1655 = vadd.f32 %v1550, %v1654
      %v1656 = vpop.f32.mrb[0].mxu0
      %1657 = vdwg.mxu0
      %vm1676 = vcmask 1046528
      %v1677 = vrot.slane %v1279, 1
      %v1678 = vrot.slane %v1280, 1
      %v1679 = vsel %vm1676, %v1677, %v1678
      %v1680 = vrot.slane %v1281, 1
      %v1681 = vsel %vm1676, %v1678, %v1680
      %v1682 = vrot.slane %v1282, 1
      %v1683 = vsel %vm1676, %v1680, %v1682
      %v1684 = vrot.slane %v1283, 1
      %v1685 = vsel %vm1676, %v1682, %v1684
      %v1686 = vrot.slane %v1284, 1
      %v1687 = vsel %vm1676, %v1684, %v1686
      %v1688 = vrot.slane %v1285, 1
      %v1689 = vsel %vm1676, %v1686, %v1688
      %v1690 = vrot.slane %v1286, 1
      %v1691 = vsel %vm1676, %v1688, %v1690
      %v1692 = vrot.slane %v1287, 1
      %v1693 = vsel %vm1676, %v1690, %v1692
      %v1694 = vrot.slane %v1288, 1
      %v1695 = vsel %vm1676, %v1692, %v1694
      %v1696 = vrot.slane %v1289, 1
      %v1697 = vsel %vm1676, %v1694, %v1696
      %v1698 = vrot.slane %v1290, 1
      %v1699 = vsel %vm1676, %v1696, %v1698
      %v1700 = vrot.slane %v1291, 1
      %v1701 = vsel %vm1676, %v1698, %v1700
      %v1702 = vrot.slane %v1292, 1
      %v1703 = vsel %vm1676, %v1700, %v1702
      %v1704 = vrot.slane %v1293, 1
      %v1705 = vsel %vm1676, %v1702, %v1704
      %v1706 = vrot.slane %v1294, 1
      %v1707 = vsel %vm1676, %v1704, %v1706
      %v1708 = vrot.slane %v1295, 1
      %v1709 = vsel %vm1676, %v1706, %v1708
      %v1710 = vrot.slane %v1296, 1
      %v1711 = vsel %vm1676, %v1708, %v1710
      %v1730 = vadd.f32 %v1588, %v1679
      %v1731 = vadd.f32 %v1591, %v1681
      %v1732 = vadd.f32 %v1596, %v1683
      %v1733 = vadd.f32 %v1599, %v1685
      %v1734 = vadd.f32 %v1604, %v1687
      %v1735 = vadd.f32 %v1607, %v1689
      %v1736 = vadd.f32 %v1612, %v1691
      %v1737 = vadd.f32 %v1615, %v1693
      %v1738 = vadd.f32 %v1620, %v1695
      %v1739 = vadd.f32 %v1623, %v1697
      %v1740 = vadd.f32 %v1628, %v1699
      %v1741 = vadd.f32 %v1631, %v1701
      %v1742 = vadd.f32 %v1636, %v1703
      %v1743 = vadd.f32 %v1639, %v1705
      %v1744 = vadd.f32 %v1644, %v1707
      %v1745 = vadd.f32 %v1647, %v1709
      %v1746 = vadd.f32 %v1652, %v1711
      %v1747 = vadd.f32 %v1655, %v1710
      %v1748 = vmax.f32 %v1730, 0.0
      %v1749 = vmax.f32 %v1731, 0.0
      %v1750 = vmax.f32 %v1732, 0.0
      %v1751 = vmax.f32 %v1733, 0.0
      %v1752 = vmax.f32 %v1734, 0.0
      %v1753 = vmax.f32 %v1735, 0.0
      %v1754 = vmax.f32 %v1736, 0.0
      %v1755 = vmax.f32 %v1737, 0.0
      %v1756 = vmax.f32 %v1738, 0.0
      %v1757 = vmax.f32 %v1739, 0.0
      %v1758 = vmax.f32 %v1740, 0.0
      %v1759 = vmax.f32 %v1741, 0.0
      %v1760 = vmax.f32 %v1742, 0.0
      %v1761 = vmax.f32 %v1743, 0.0
      %v1762 = vmax.f32 %v1744, 0.0
      %v1763 = vmax.f32 %v1745, 0.0
      %v1764 = vmax.f32 %v1746, 0.0
      %v1765 = vmax.f32 %v1747, 0.0
      %v1766 = vmul.f32 %v1748, %v884
      %v1767 = vmul.f32 %v1749, %v889
      %v1768 = vmul.f32 %v1750, %v894
      %v1769 = vmul.f32 %v1751, %v899
      %v1770 = vmul.f32 %v1752, %v904
      %v1771 = vmul.f32 %v1753, %v909
      %v1772 = vmul.f32 %v1754, %v914
      %v1773 = vmul.f32 %v1755, %v919
      %v1774 = vmul.f32 %v1756, %v924
      %v1775 = vmul.f32 %v1757, %v929
      %v1776 = vmul.f32 %v1758, %v934
      %v1777 = vmul.f32 %v1759, %v939
      %v1778 = vmul.f32 %v1760, %v944
      %v1779 = vmul.f32 %v1761, %v949
      %v1780 = vmul.f32 %v1762, %v954
      %v1781 = vmul.f32 %v1763, %v959
      %v1782 = vmul.f32 %v1764, %v964
      %v1783 = vmul.f32 %v1765, %v969
      %v1784 = vld [vmem:[%s253] sm:$0x1]
      %v1785 = vsel %vm991, 0, %v1784
      %1786 = vst [vmem:[%s253] sm:$0x1] %v1785
      %vm1787 = vcmask 1043459
      %vm1788 = vsmask.f32 7950
      %vm1789 = vmand %vm1787, %vm1788
      %v1790 = vld [vmem:[%s253 + $0x44] sm:$0x8]
      %v1791 = vsel %vm1789, 0, %v1790
      %1792 = vst [vmem:[%s253 + $0x44] sm:$0x8] %v1791
      %v1793 = vpack.c.bf16 %v1767, %v1766
      %v1794 = vpack.c.bf16 %v1769, %v1768
      %v1795 = vpack.c.bf16 %v1771, %v1770
      %v1796 = vpack.c.bf16 %v1773, %v1772
      %v1797 = vpack.c.bf16 %v1775, %v1774
      %v1798 = vpack.c.bf16 %v1777, %v1776
      %v1799 = vpack.c.bf16 %v1779, %v1778
      %v1800 = vpack.c.bf16 %v1781, %v1780
      %v1801 = vpack.c.bf16 %v1783, %v1782
      %v1811 = vunpack.c.l.b16 %v1793
      %v1812 = vunpack.c.h.b16 %v1793
      %v1813 = vunpack.c.l.b16 %v1794
      %v1814 = vunpack.c.h.b16 %v1794
      %v1815 = vunpack.c.l.b16 %v1795
      %v1816 = vunpack.c.h.b16 %v1795
      %v1817 = vunpack.c.l.b16 %v1796
      %v1818 = vunpack.c.h.b16 %v1796
      %v1819 = vunpack.c.l.b16 %v1797
      %v1820 = vunpack.c.h.b16 %v1797
      %v1821 = vunpack.c.l.b16 %v1798
      %v1822 = vunpack.c.h.b16 %v1798
      %v1823 = vunpack.c.l.b16 %v1799
      %v1824 = vunpack.c.h.b16 %v1799
      %v1825 = vunpack.c.l.b16 %v1800
      %v1826 = vunpack.c.h.b16 %v1800
      %v1827 = vunpack.c.l.b16 %v1801
      %v1828 = vunpack.c.h.b16 %v1801
      %v1829 = vpack.c.b16 %v1811, %v1811
      %v1830 = vpack.c.b16 %v1812, %v1812
      %v1831 = vpack.c.b16 %v1813, %v1813
      %v1832 = vpack.c.b16 %v1814, %v1814
      %v1833 = vpack.c.b16 %v1815, %v1815
      %v1834 = vpack.c.b16 %v1816, %v1816
      %v1835 = vpack.c.b16 %v1817, %v1817
      %v1836 = vpack.c.b16 %v1818, %v1818
      %v1837 = vpack.c.b16 %v1819, %v1819
      %v1838 = vpack.c.b16 %v1820, %v1820
      %v1839 = vpack.c.b16 %v1821, %v1821
      %v1840 = vpack.c.b16 %v1822, %v1822
      %v1841 = vpack.c.b16 %v1823, %v1823
      %v1842 = vpack.c.b16 %v1824, %v1824
      %v1843 = vpack.c.b16 %v1825, %v1825
      %v1844 = vpack.c.b16 %v1826, %v1826
      %v1845 = vpack.c.b16 %v1827, %v1827
      %v1846 = vpack.c.b16 %v1828, %v1828
      %vm1847 = vsmask.f32 4368
      %vm1848 = vmor %vm990, %vm1847
      %v1850 = vshrl.u32 %v1829, 16
      %v1852 = vrot.slane %v1850, 7
      %v1853 = vshll.u32 %v1829, 16
      %v1855 = vor.u32 %v1852, %v1853
      %v1856 = vrot.slane %v1852, 4
      %v1858 = vshrl.u32 %v1830, 16
      %v1860 = vrot.slane %v1858, 7
      %v1861 = vshll.u32 %v1830, 16
      %v1863 = vor.u32 %v1860, %v1861
      %v1864 = vsel %vm1848, %v1856, %v1863
      %v1865 = vrot.slane %v1860, 4
      %v1867 = vshrl.u32 %v1831, 16
      %v1869 = vrot.slane %v1867, 7
      %v1870 = vshll.u32 %v1831, 16
      %v1872 = vor.u32 %v1869, %v1870
      %v1873 = vsel %vm1848, %v1865, %v1872
      %v1874 = vrot.slane %v1869, 4
      %v1876 = vshrl.u32 %v1832, 16
      %v1878 = vrot.slane %v1876, 7
      %v1879 = vshll.u32 %v1832, 16
      %v1881 = vor.u32 %v1878, %v1879
      %v1882 = vsel %vm1848, %v1874, %v1881
      %v1883 = vrot.slane %v1878, 4
      %v1885 = vshrl.u32 %v1833, 16
      %v1887 = vrot.slane %v1885, 7
      %v1888 = vshll.u32 %v1833, 16
      %v1890 = vor.u32 %v1887, %v1888
      %v1891 = vsel %vm1848, %v1883, %v1890
      %v1892 = vrot.slane %v1887, 4
      %v1894 = vshrl.u32 %v1834, 16
      %v1896 = vrot.slane %v1894, 7
      %v1897 = vshll.u32 %v1834, 16
      %v1899 = vor.u32 %v1896, %v1897
      %v1900 = vsel %vm1848, %v1892, %v1899
      %v1901 = vrot.slane %v1896, 4
      %v1903 = vshrl.u32 %v1835, 16
      %v1905 = vrot.slane %v1903, 7
      %v1906 = vshll.u32 %v1835, 16
      %v1908 = vor.u32 %v1905, %v1906
      %v1909 = vsel %vm1848, %v1901, %v1908
      %v1910 = vrot.slane %v1905, 4
      %v1912 = vshrl.u32 %v1836, 16
      %v1914 = vrot.slane %v1912, 7
      %v1915 = vshll.u32 %v1836, 16
      %v1917 = vor.u32 %v1914, %v1915
      %v1918 = vsel %vm1848, %v1910, %v1917
      %v1919 = vrot.slane %v1914, 4
      %v1921 = vshrl.u32 %v1837, 16
      %v1923 = vrot.slane %v1921, 7
      %v1924 = vshll.u32 %v1837, 16
      %v1926 = vor.u32 %v1923, %v1924
      %v1927 = vsel %vm1848, %v1919, %v1926
      %v1928 = vrot.slane %v1923, 4
      %v1930 = vshrl.u32 %v1838, 16
      %v1932 = vrot.slane %v1930, 7
      %v1933 = vshll.u32 %v1838, 16
      %v1935 = vor.u32 %v1932, %v1933
      %v1936 = vsel %vm1848, %v1928, %v1935
      %v1937 = vrot.slane %v1932, 4
      %v1939 = vshrl.u32 %v1839, 16
      %v1941 = vrot.slane %v1939, 7
      %v1942 = vshll.u32 %v1839, 16
      %v1944 = vor.u32 %v1941, %v1942
      %v1945 = vsel %vm1848, %v1937, %v1944
      %v1946 = vrot.slane %v1941, 4
      %v1948 = vshrl.u32 %v1840, 16
      %v1950 = vrot.slane %v1948, 7
      %v1951 = vshll.u32 %v1840, 16
      %v1953 = vor.u32 %v1950, %v1951
      %v1954 = vsel %vm1848, %v1946, %v1953
      %v1955 = vrot.slane %v1950, 4
      %v1957 = vshrl.u32 %v1841, 16
      %v1959 = vrot.slane %v1957, 7
      %v1960 = vshll.u32 %v1841, 16
      %v1962 = vor.u32 %v1959, %v1960
      %v1963 = vsel %vm1848, %v1955, %v1962
      %v1964 = vrot.slane %v1959, 4
      %v1966 = vshrl.u32 %v1842, 16
      %v1968 = vrot.slane %v1966, 7
      %v1969 = vshll.u32 %v1842, 16
      %v1971 = vor.u32 %v1968, %v1969
      %v1972 = vsel %vm1848, %v1964, %v1971
      %v1973 = vrot.slane %v1968, 4
      %v1975 = vshrl.u32 %v1843, 16
      %v1977 = vrot.slane %v1975, 7
      %v1978 = vshll.u32 %v1843, 16
      %v1980 = vor.u32 %v1977, %v1978
      %v1981 = vsel %vm1848, %v1973, %v1980
      %v1982 = vrot.slane %v1977, 4
      %v1984 = vshrl.u32 %v1844, 16
      %v1986 = vrot.slane %v1984, 7
      %v1987 = vshll.u32 %v1844, 16
      %v1989 = vor.u32 %v1986, %v1987
      %v1990 = vsel %vm1848, %v1982, %v1989
      %v1991 = vrot.slane %v1986, 4
      %v1993 = vshrl.u32 %v1845, 16
      %v1995 = vrot.slane %v1993, 7
      %v1996 = vshll.u32 %v1845, 16
      %v1998 = vor.u32 %v1995, %v1996
      %v1999 = vsel %vm1848, %v1991, %v1998
      %v2000 = vrot.slane %v1995, 4
      %v2002 = vshrl.u32 %v1846, 16
      %v2004 = vrot.slane %v2002, 7
      %v2005 = vshll.u32 %v1846, 16
      %v2007 = vor.u32 %v2004, %v2005
      %v2008 = vsel %vm1848, %v2000, %v2007
      %vm2027 = vcmask 1043456
      %vm2028 = vmand %vm2027, %vm1091
      %v2029 = vld [vmem:[%s253] sm:$0xf]
      %v2030 = vsel %vm2028, %v1855, %v2029
      %2031 = vst [vmem:[%s253] sm:$0xf] %v2030
      %2032 = vst [vmem:[%s253 + $0x4] sm:$0xf] %v1864
      %2033 = vst [vmem:[%s253 + $0x8] sm:$0xf] %v1873
      %2034 = vst [vmem:[%s253 + $0xc] sm:$0xf] %v1882
      %2035 = vst [vmem:[%s253 + $0x10] sm:$0xf] %v1891
      %2036 = vst [vmem:[%s253 + $0x14] sm:$0xf] %v1900
      %2037 = vst [vmem:[%s253 + $0x18] sm:$0xf] %v1909
      %2038 = vst [vmem:[%s253 + $0x1c] sm:$0xf] %v1918
      %2039 = vst [vmem:[%s253 + $0x20] sm:$0xf] %v1927
      %2040 = vst [vmem:[%s253 + $0x24] sm:$0xf] %v1936
      %2041 = vst [vmem:[%s253 + $0x28] sm:$0xf] %v1945
      %2042 = vst [vmem:[%s253 + $0x2c] sm:$0xf] %v1954
      %2043 = vst [vmem:[%s253 + $0x30] sm:$0xf] %v1963
      %2044 = vst [vmem:[%s253 + $0x34] sm:$0xf] %v1972
      %2045 = vst [vmem:[%s253 + $0x38] sm:$0xf] %v1981
      %2046 = vst [vmem:[%s253 + $0x3c] sm:$0xf] %v1990
      %2047 = vst [vmem:[%s253 + $0x40] sm:$0xf] %v1999
      %vm2048 = vsmask.f32 3328
      %vm2049 = vmand %vm2027, %vm2048
      %v2050 = vld [vmem:[%s253 + $0x44] sm:$0xf]
      %v2051 = vsel %vm2049, %v2008, %v2050
      %2052 = vst [vmem:[%s253 + $0x44] sm:$0xf] %v2051
      %s2053 = smul.u32 18, %s17
      %p2054 = scmp.lt.s32.totalorder %s2053, 71
      %s2055 = scalar_select %p2054, %s2053, 71
      %s2056 = smul.addr %s2055, 4
      %s2057 = scalar_lea.vmem %s6, %s2056
      // Predicated region
      $region45: #{basic_block_forward.1} parent=43 // pred_check
        %p2058 = pneg %p166
      $region46: #{basic_block_forward.1} parent=43 // pred_check_branch
        %2060 = sbr.rel (%p2058) target = $region48
      $region47: #{basic_block_forward.1} parent=43 // pred_region
        %s2061 = smul.u32 18, %s17
      $region48: #{basic_block_forward.1} parent=43 // pred_fallthru
        _
    $region44: #{basic_block_forward.1} parent=5 // pred_fallthru
      _
    %p2062 = scmp.le.s32.totalorder 2, %s12
    // Predicated region
    $region49: #{basic_block_forward.1} parent=5 // pred_check
      %p2063 = pneg %p2062
    $region50: #{basic_block_forward.1} parent=5 // pred_check_branch
      %2065 = sbr.rel (%p2063) target = $region52
    $region51: #{basic_block_forward.1} parent=5 // pred_region
      %s2066 = ssub.s32 %s12, 2
      // Predicated region
      $region53: #{basic_block_forward.1} parent=51 // pred_check
        %p2067 = pneg %p172
      $region54: #{basic_block_forward.1} parent=51 // pred_check_branch
        %2069 = sbr.rel (%p2067) target = $region56
      $region55: #{basic_block_forward.1} parent=51 // pred_region
        %s2070 = smul.u32 18, %s18
        %p2071 = scmp.lt.s32.totalorder %s2070, 71
        %s2072 = scalar_select %p2071, %s2070, 71
        %s2073 = smul.addr %s2072, 4
        %s2074 = scalar_lea.vmem %s6, %s2073
      $region56: #{basic_block_forward.1} parent=51 // pred_fallthru
        _
    $region52: #{basic_block_forward.1} parent=5 // pred_fallthru
      _
  $region6: #{basic_block_forward.1} parent=0 // loop_footer
    %s16 = sadd.s32 1, %s12
  $region7: #{basic_block_forward.1} parent=0 // loop_footer_branch
    %11 = sbr.rel target = $region3
  $region8: #{basic_block_forward.1} parent=0 // loop_exit
    _

</llo_original>
